<compile_context>
chip_gen: v6e
topology: v6e:2x2x1
jax: 0.10.0
libtpu: 0.0.40
codegen_flags: <defaults>
</compile_context>

<pallas_src>
import math
import functools

import jax
import jax.numpy as jnp
from jax import lax
from jax.experimental import pallas as pl
from jax.experimental.pallas import tpu as pltpu


def transformer_layer_kernel(x_ref,
                             wqkv_ref, bqkv_ref,
                             wo_ref, bo_ref,
                             ln_a_ref, ln_b_ref,
                             w1c_ref, b1c_ref, w2c_ref, b2_ref,
                             out_ref,
                             ctx_ref,
                             *, n_heads, eps):
    Bt, S, D = x_ref.shape
    M = Bt * S
    d_k = D // n_heads
    scale = 1.0 / math.sqrt(d_k)

    # Residual path stays f32; bf16 copies only feed the MXU.
    x2d = x_ref[...].astype(jnp.float32).reshape(M, D)
    x2d_bf = x2d.astype(jnp.bfloat16)

    # ---- Fused Q/K/V projection: one (M, D) x (D, 3D) MXU call ----
    qkv = jnp.dot(x2d_bf, wqkv_ref[...],
                  preferred_element_type=jnp.float32) + bqkv_ref[...]
    q3 = qkv[:, 0 * D:1 * D].reshape(Bt, S, D).astype(jnp.bfloat16)
    k3 = qkv[:, 1 * D:2 * D].reshape(Bt, S, D).astype(jnp.bfloat16)
    v3 = qkv[:, 2 * D:3 * D].reshape(Bt, S, D).astype(jnp.bfloat16)

    # ---- Multi-head self attention (query = key = value = x) ----
    # Each head's context is stored into its lane slice of a (M, D) VMEM
    # scratch; the output projection is a single full-D matmul afterwards.
    # TODO(synk): mask=None path only; add key masking + flash-style key-block
    # tiling (online softmax) before long sequences (full (Bt,S,S) scores here).
    # TODO(synk): when d_k < 128 the per-head lane slices are not 128-aligned;
    # batching the score/context einsums over a head axis would avoid relayouts.
    for h in range(n_heads):                              # static unroll (small)
        lo = h * d_k
        qh = q3[:, :, lo:lo + d_k]
        kh = k3[:, :, lo:lo + d_k]
        vh = v3[:, :, lo:lo + d_k]
        s = jnp.einsum('bqd,bkd->bqk', qh, kh,
                       preferred_element_type=jnp.float32) * scale   # (Bt,S,S)
        s = s - jnp.max(s, axis=-1, keepdims=True)
        p = jnp.exp(s)
        p = p * pl.reciprocal(jnp.sum(p, axis=-1, keepdims=True), approx=True)
        ctx = jnp.einsum('bqk,bkd->bqd', p.astype(jnp.bfloat16), vh,
                         preferred_element_type=jnp.float32)         # (Bt,S,d_k)
        ctx_ref[:, lo:lo + d_k] = ctx.reshape(M, d_k)

    # One full-D output projection (restores MXU contraction width).
    attn = jnp.dot(ctx_ref[...].astype(jnp.bfloat16), wo_ref[...],
                   preferred_element_type=jnp.float32) + bo_ref[...]

    # ---- LayerNormalization (LeafNATS flavour, shared a_2 / b_2) ----
    ln_a = ln_a_ref[...]
    ln_b = ln_b_ref[...]

    def layer_norm(y):                                    # y: (M, D) f32
        mean = jnp.mean(y, axis=-1, keepdims=True)
        diff = y - mean
        var = jnp.sum(diff * diff, axis=-1, keepdims=True) * (1.0 / (D - 1))
        inv = 1.0 / (jnp.sqrt(var) + eps)                 # exact; matches torch.std + eps
        return ln_a * diff * inv + ln_b

    h1 = layer_norm(x2d + attn)                           # (M, D) f32
    h1_bf = h1.astype(jnp.bfloat16)

    # ---- Position-wise feed forward: W2(relu(W1 h1 + b1)) + b2 ----
    # Weights are host-pre-chunked along the 4*D hidden dim:
    #   w1c (nc, D, C), b1c (nc, 1, C), w2c (nc, C, D).
    # lax.fori_loop bounds the live activation set to a single chunk.
    n_chunks = w1c_ref.shape[0]

    def ffn_body(c, ff):
        a = jnp.dot(h1_bf, w1c_ref[c],
                    preferred_element_type=jnp.float32) + b1c_ref[c]
        a = jnp.maximum(a, 0.0).astype(jnp.bfloat16)
        return ff + jnp.dot(a, w2c_ref[c], preferred_element_type=jnp.float32)

    ff = lax.fori_loop(0, n_chunks, ffn_body, jnp.zeros((M, D), jnp.float32))
    ff = ff + b2_ref[...]

    h2 = layer_norm(h1 + ff)
    out_ref[...] = h2.reshape(Bt, S, D).astype(out_ref.dtype)


def _pick_ffn_chunk(H):
    """Largest MXU-friendly chunk (<=512, multiple of 128 if possible) dividing H."""
    if H <= 512:
        return H
    for c in (512, 384, 256, 128):
        if H % c == 0:
            return c
    return max(c for c in range(1, 513) if H % c == 0)


def _pick_batch_tile(B, S, D, H, budget_bytes=32 << 20):
    """Largest batch tile that keeps the grid >= 2 steps and fits the budget."""
    def act_bytes(bt):
        M = bt * S
        return (14 * 4 * M * D                     # (M, D)-sized f32/bf16 slabs
                + 3 * 4 * bt * S * S               # per-head score / prob tiles
                + 3 * 4 * M * min(H, 512))         # FFN chunk activations
    divisors = [d for d in range(1, B + 1) if B % d == 0]
    cands = [d for d in divisors if B // d >= 2] or divisors
    for d in sorted(cands, reverse=True):
        if act_bytes(d) <= budget_bytes:
            return d
    return min(cands)


def transformer_layer(x, params, *, n_heads, eps=1e-6,
                      batch_tile=None, ffn_chunk=None):
    B, S, D = x.shape
    assert D % n_heads == 0, "n_heads must divide the model dimension"
    H = params["w1"].shape[1]

    if ffn_chunk is None or H % ffn_chunk != 0:
        ffn_chunk = _pick_ffn_chunk(H)
    n_chunks = H // ffn_chunk

    if batch_tile is None:
        batch_tile = _pick_batch_tile(B, S, D, H)
    assert B % batch_tile == 0, "batch_tile must divide batch"

    bf = jnp.bfloat16
    # Fused QKV weight/bias; FFN weights pre-chunked along the hidden dim so the
    # kernel can index chunks on a leading axis (well supported dynamic index).
    wqkv = jnp.concatenate(
        [params["wq"], params["wk"], params["wv"]], axis=1).astype(bf)      # (D, 3D)
    bqkv = jnp.concatenate(
        [params["bq"], params["bk"], params["bv"]], axis=1)                 # (1, 3D)
    w1c = (params["w1"].reshape(D, n_chunks, ffn_chunk)
           .transpose(1, 0, 2).astype(bf))                                  # (nc, D, C)
    b1c = params["b1"].reshape(1, n_chunks, ffn_chunk).transpose(1, 0, 2)   # (nc, 1, C)
    w2c = params["w2"].reshape(n_chunks, ffn_chunk, D).astype(bf)           # (nc, C, D)

    weights = [
        wqkv, bqkv,
        params["wo"].astype(bf), params["bo"],
        params["ln_a"], params["ln_b"],
        w1c, b1c, w2c, params["b2"],
    ]

    x_spec = pl.BlockSpec((batch_tile, S, D), lambda b: (b, 0, 0))
    out_spec = pl.BlockSpec((batch_tile, S, D), lambda b: (b, 0, 0))
    # Weights / biases: full-array block, constant index_map -> single-buffered
    # (double-buffering a never-changing block is pure VMEM waste).
    w_specs = [
        pl.BlockSpec(w.shape, (lambda b, nd=w.ndim: (0,) * nd),
                     pipeline_mode=pl.Buffered(1))
        for w in weights
    ]

    # Explicit VMEM budget: single-buffered weights + activation slabs + headroom.
    M = batch_tile * S
    weight_bytes = sum(int(w.size) * w.dtype.itemsize for w in weights)
    act_bytes = (14 * 4 * M * D
                 + 3 * 4 * batch_tile * S * S
                 + 3 * 4 * M * ffn_chunk)
    vmem_bytes = int(1.3 * (weight_bytes + act_bytes)) + (4 << 20)
    vmem_bytes = max(32 << 20, min(vmem_bytes, 128 << 20))

    kernel = functools.partial(transformer_layer_kernel,
                               n_heads=n_heads, eps=eps)

    return pl.pallas_call(
        kernel,
        out_shape=jax.ShapeDtypeStruct((B, S, D), jnp.float32),
        grid_spec=pltpu.PrefetchScalarGridSpec(
            num_scalar_prefetch=0,
            grid=(B // batch_tile,),
            in_specs=[x_spec] + w_specs,
            out_specs=out_spec,
            scratch_shapes=[pltpu.VMEM((M, D), jnp.float32)],  # per-head ctx slab
        ),
        compiler_params=pltpu.CompilerParams(
            dimension_semantics=("parallel",),
            vmem_limit_bytes=vmem_bytes),
    )(x, *weights)


def init_params(key, input_size):
    D = input_size
    H = 4 * input_size
    ks = jax.random.split(key, 8)
    s = 0.05
    return {
        # attention projections (stored as (in, out))
        "wq": s * jax.random.normal(ks[0], (D, D), jnp.float32),
        "bq": jnp.zeros((1, D), jnp.float32),
        "wk": s * jax.random.normal(ks[1], (D, D), jnp.float32),
        "bk": jnp.zeros((1, D), jnp.float32),
        "wv": s * jax.random.normal(ks[2], (D, D), jnp.float32),
        "bv": jnp.zeros((1, D), jnp.float32),
        "wo": s * jax.random.normal(ks[3], (D, D), jnp.float32),
        "bo": jnp.zeros((1, D), jnp.float32),
        # shared LayerNormalization parameters (a_2 = ones, b_2 = zeros)
        "ln_a": jnp.ones((1, D), jnp.float32),
        "ln_b": jnp.zeros((1, D), jnp.float32),
        # position-wise feed forward
        "w1": s * jax.random.normal(ks[4], (D, H), jnp.float32),
        "b1": jnp.zeros((1, H), jnp.float32),
        "w2": s * jax.random.normal(ks[5], (H, D), jnp.float32),
        "b2": jnp.zeros((1, D), jnp.float32),
    }


if __name__ == "__main__":
    B, S, D = 2, 8, 32
    n_heads = 4

    key = jax.random.PRNGKey(0)
    k_x, k_p = jax.random.split(key)
    x = jax.random.normal(k_x, (B, S, D), jnp.float32)
    params = init_params(k_p, D)

    out = transformer_layer(x, params, n_heads=n_heads)
    out = jax.block_until_ready(out)
    assert out.shape == (B, S, D)
    assert bool(jnp.all(jnp.isfinite(out)))
    print("KERNEL_OK")
</pallas_src>

<mosaic_0001>
module attributes {stable_mosaic.version = 11 : i64} {
  func.func @transformer_layer_kernel(%arg0: i32, %arg1: memref<1x8x32xf32, #tpu.memory_space<vmem>>, %arg2: memref<32x96xbf16, #tpu.memory_space<vmem>>, %arg3: memref<1x96xf32, #tpu.memory_space<vmem>>, %arg4: memref<32x32xbf16, #tpu.memory_space<vmem>>, %arg5: memref<1x32xf32, #tpu.memory_space<vmem>>, %arg6: memref<1x32xf32, #tpu.memory_space<vmem>>, %arg7: memref<1x32xf32, #tpu.memory_space<vmem>>, %arg8: memref<1x32x128xbf16, #tpu.memory_space<vmem>>, %arg9: memref<1x1x128xf32, #tpu.memory_space<vmem>>, %arg10: memref<1x128x32xbf16, #tpu.memory_space<vmem>>, %arg11: memref<1x32xf32, #tpu.memory_space<vmem>>, %arg12: memref<1x8x32xf32, #tpu.memory_space<vmem>>, %arg13: memref<8x32xf32, #tpu.memory_space<vmem>>) attributes {dimension_semantics = [#tpu.dimension_semantics<parallel>], iteration_bounds = array<i64: 2>, scalar_prefetch = 0 : i64, scratch_operands = 1 : i64, tpu.core_type = #tpu.core_type<tc>, window_params = [{transform_indices = @transform_0, window_bounds = array<i64: 1, 8, 32>}, {pipeline_mode = #tpu.pipeline_mode<synchronous>, transform_indices = @transform_1, window_bounds = array<i64: 32, 96>}, {pipeline_mode = #tpu.pipeline_mode<synchronous>, transform_indices = @transform_2, window_bounds = array<i64: 1, 96>}, {pipeline_mode = #tpu.pipeline_mode<synchronous>, transform_indices = @transform_3, window_bounds = array<i64: 32, 32>}, {pipeline_mode = #tpu.pipeline_mode<synchronous>, transform_indices = @transform_4, window_bounds = array<i64: 1, 32>}, {pipeline_mode = #tpu.pipeline_mode<synchronous>, transform_indices = @transform_5, window_bounds = array<i64: 1, 32>}, {pipeline_mode = #tpu.pipeline_mode<synchronous>, transform_indices = @transform_6, window_bounds = array<i64: 1, 32>}, {pipeline_mode = #tpu.pipeline_mode<synchronous>, transform_indices = @transform_7, window_bounds = array<i64: 1, 32, 128>}, {pipeline_mode = #tpu.pipeline_mode<synchronous>, transform_indices = @transform_8, window_bounds = array<i64: 1, 1, 128>}, {pipeline_mode = #tpu.pipeline_mode<synchronous>, transform_indices = @transform_9, window_bounds = array<i64: 1, 128, 32>}, {pipeline_mode = #tpu.pipeline_mode<synchronous>, transform_indices = @transform_10, window_bounds = array<i64: 1, 32>}, {transform_indices = @transform_11, window_bounds = array<i64: 1, 8, 32>}]} {
    %c0 = arith.constant 0 : index
    %c0_0 = arith.constant 0 : index
    %c0_1 = arith.constant 0 : index
    %0 = vector.load %arg1[%c0, %c0_0, %c0_1] : memref<1x8x32xf32, #tpu.memory_space<vmem>>, vector<1x8x32xf32>
    %1 = vector.shape_cast %0 : vector<1x8x32xf32> to vector<8x32xf32>
    %2 = arith.truncf %1 : vector<8x32xf32> to vector<8x32xbf16>
    %c0_2 = arith.constant 0 : index
    %c0_3 = arith.constant 0 : index
    %3 = vector.load %arg2[%c0_2, %c0_3] : memref<32x96xbf16, #tpu.memory_space<vmem>>, vector<32x96xbf16>
    %cst = arith.constant dense<0.000000e+00> : vector<8x96xf32>
    %4 = tpu.matmul %2, %3, %cst {dimension_numbers = #tpu.dot_dimension_numbers<[1], [0], [0], [1], [0, 0, 1, 1], [], []>} : vector<8x32xbf16>, vector<32x96xbf16>, vector<8x96xf32> -> vector<8x96xf32>
    %c0_4 = arith.constant 0 : index
    %c0_5 = arith.constant 0 : index
    %5 = vector.load %arg3[%c0_4, %c0_5] : memref<1x96xf32, #tpu.memory_space<vmem>>, vector<1x96xf32>
    %6 = vector.broadcast %5 : vector<1x96xf32> to vector<8x96xf32>
    %7 = arith.addf %4, %6 : vector<8x96xf32>
    %8 = vector.extract_strided_slice %7 {offsets = [0, 0], sizes = [8, 32], strides = [1, 1]} : vector<8x96xf32> to vector<8x32xf32>
    %9 = vector.shape_cast %8 : vector<8x32xf32> to vector<1x8x32xf32>
    %10 = arith.truncf %9 : vector<1x8x32xf32> to vector<1x8x32xbf16>
    %11 = vector.extract_strided_slice %7 {offsets = [0, 32], sizes = [8, 32], strides = [1, 1]} : vector<8x96xf32> to vector<8x32xf32>
    %12 = vector.shape_cast %11 : vector<8x32xf32> to vector<1x8x32xf32>
    %13 = arith.truncf %12 : vector<1x8x32xf32> to vector<1x8x32xbf16>
    %14 = vector.extract_strided_slice %7 {offsets = [0, 64], sizes = [8, 32], strides = [1, 1]} : vector<8x96xf32> to vector<8x32xf32>
    %15 = vector.shape_cast %14 : vector<8x32xf32> to vector<1x8x32xf32>
    %16 = arith.truncf %15 : vector<1x8x32xf32> to vector<1x8x32xbf16>
    %17 = vector.extract_strided_slice %10 {offsets = [0, 0, 0], sizes = [1, 8, 8], strides = [1, 1, 1]} : vector<1x8x32xbf16> to vector<1x8x8xbf16>
    %18 = vector.extract_strided_slice %13 {offsets = [0, 0, 0], sizes = [1, 8, 8], strides = [1, 1, 1]} : vector<1x8x32xbf16> to vector<1x8x8xbf16>
    %19 = vector.extract_strided_slice %16 {offsets = [0, 0, 0], sizes = [1, 8, 8], strides = [1, 1, 1]} : vector<1x8x32xbf16> to vector<1x8x8xbf16>
    "tpu.trace_start"() <{level = 10 : i32, message = "bqd,bkd->bqk"}> : () -> ()
    %cst_6 = arith.constant dense<0.000000e+00> : vector<1x8x8xf32>
    %20 = tpu.matmul %17, %18, %cst_6 {dimension_numbers = #tpu.dot_dimension_numbers<[2], [2], [1], [1], [0, 0, 0, 1, 1, 1], [0], [0]>} : vector<1x8x8xbf16>, vector<1x8x8xbf16>, vector<1x8x8xf32> -> vector<1x8x8xf32>
    "tpu.trace_stop"() : () -> ()
    %cst_7 = arith.constant 0.353553385 : f32
    %21 = vector.broadcast %cst_7 : f32 to vector<1x8x8xf32>
    %22 = arith.mulf %20, %21 : vector<1x8x8xf32>
    %cst_8 = arith.constant dense<0xFF800000> : vector<1x8xf32>
    %23 = vector.multi_reduction <maximumf>, %22, %cst_8 [2] : vector<1x8x8xf32> to vector<1x8xf32>
    %24 = vector.shape_cast %23 : vector<1x8xf32> to vector<1x8x1xf32>
    %25 = vector.broadcast %24 : vector<1x8x1xf32> to vector<1x8x8xf32>
    %26 = arith.subf %22, %25 : vector<1x8x8xf32>
    %27 = math.exp %26 : vector<1x8x8xf32>
    %cst_9 = arith.constant dense<0.000000e+00> : vector<1x8xf32>
    %28 = vector.multi_reduction <add>, %27, %cst_9 [2] : vector<1x8x8xf32> to vector<1x8xf32>
    %29 = vector.shape_cast %28 : vector<1x8xf32> to vector<1x8x1xf32>
    %30 = tpu.reciprocal %29 {approx = true} : vector<1x8x1xf32> -> vector<1x8x1xf32>
    %31 = vector.broadcast %30 : vector<1x8x1xf32> to vector<1x8x8xf32>
    %32 = arith.mulf %27, %31 : vector<1x8x8xf32>
    %33 = arith.truncf %32 : vector<1x8x8xf32> to vector<1x8x8xbf16>
    "tpu.trace_start"() <{level = 10 : i32, message = "bqk,bkd->bqd"}> : () -> ()
    %cst_10 = arith.constant dense<0.000000e+00> : vector<1x8x8xf32>
    %34 = tpu.matmul %33, %19, %cst_10 {dimension_numbers = #tpu.dot_dimension_numbers<[2], [1], [1], [2], [0, 0, 0, 1, 1, 2], [0], [0]>} : vector<1x8x8xbf16>, vector<1x8x8xbf16>, vector<1x8x8xf32> -> vector<1x8x8xf32>
    "tpu.trace_stop"() : () -> ()
    %35 = vector.shape_cast %34 : vector<1x8x8xf32> to vector<8x8xf32>
    %c0_11 = arith.constant 0 : index
    %c0_12 = arith.constant 0 : index
    %36 = vector.load %arg13[%c0_11, %c0_12] : memref<8x32xf32, #tpu.memory_space<vmem>>, vector<8x8xf32>
    tpu.vector_store %arg13[%c0_11, %c0_12], %35 {strides = array<i32>} : memref<8x32xf32, #tpu.memory_space<vmem>>, vector<8x8xf32>,
    %37 = vector.extract_strided_slice %10 {offsets = [0, 0, 8], sizes = [1, 8, 8], strides = [1, 1, 1]} : vector<1x8x32xbf16> to vector<1x8x8xbf16>
    %38 = vector.extract_strided_slice %13 {offsets = [0, 0, 8], sizes = [1, 8, 8], strides = [1, 1, 1]} : vector<1x8x32xbf16> to vector<1x8x8xbf16>
    %39 = vector.extract_strided_slice %16 {offsets = [0, 0, 8], sizes = [1, 8, 8], strides = [1, 1, 1]} : vector<1x8x32xbf16> to vector<1x8x8xbf16>
    "tpu.trace_start"() <{level = 10 : i32, message = "bqd,bkd->bqk"}> : () -> ()
    %cst_13 = arith.constant dense<0.000000e+00> : vector<1x8x8xf32>
    %40 = tpu.matmul %37, %38, %cst_13 {dimension_numbers = #tpu.dot_dimension_numbers<[2], [2], [1], [1], [0, 0, 0, 1, 1, 1], [0], [0]>} : vector<1x8x8xbf16>, vector<1x8x8xbf16>, vector<1x8x8xf32> -> vector<1x8x8xf32>
    "tpu.trace_stop"() : () -> ()
    %cst_14 = arith.constant 0.353553385 : f32
    %41 = vector.broadcast %cst_14 : f32 to vector<1x8x8xf32>
    %42 = arith.mulf %40, %41 : vector<1x8x8xf32>
    %cst_15 = arith.constant dense<0xFF800000> : vector<1x8xf32>
    %43 = vector.multi_reduction <maximumf>, %42, %cst_15 [2] : vector<1x8x8xf32> to vector<1x8xf32>
    %44 = vector.shape_cast %43 : vector<1x8xf32> to vector<1x8x1xf32>
    %45 = vector.broadcast %44 : vector<1x8x1xf32> to vector<1x8x8xf32>
    %46 = arith.subf %42, %45 : vector<1x8x8xf32>
    %47 = math.exp %46 : vector<1x8x8xf32>
    %cst_16 = arith.constant dense<0.000000e+00> : vector<1x8xf32>
    %48 = vector.multi_reduction <add>, %47, %cst_16 [2] : vector<1x8x8xf32> to vector<1x8xf32>
    %49 = vector.shape_cast %48 : vector<1x8xf32> to vector<1x8x1xf32>
    %50 = tpu.reciprocal %49 {approx = true} : vector<1x8x1xf32> -> vector<1x8x1xf32>
    %51 = vector.broadcast %50 : vector<1x8x1xf32> to vector<1x8x8xf32>
    %52 = arith.mulf %47, %51 : vector<1x8x8xf32>
    %53 = arith.truncf %52 : vector<1x8x8xf32> to vector<1x8x8xbf16>
    "tpu.trace_start"() <{level = 10 : i32, message = "bqk,bkd->bqd"}> : () -> ()
    %cst_17 = arith.constant dense<0.000000e+00> : vector<1x8x8xf32>
    %54 = tpu.matmul %53, %39, %cst_17 {dimension_numbers = #tpu.dot_dimension_numbers<[2], [1], [1], [2], [0, 0, 0, 1, 1, 2], [0], [0]>} : vector<1x8x8xbf16>, vector<1x8x8xbf16>, vector<1x8x8xf32> -> vector<1x8x8xf32>
    "tpu.trace_stop"() : () -> ()
    %55 = vector.shape_cast %54 : vector<1x8x8xf32> to vector<8x8xf32>
    %c0_18 = arith.constant 0 : index
    %c8 = arith.constant 8 : index
    %56 = vector.load %arg13[%c0_18, %c8] : memref<8x32xf32, #tpu.memory_space<vmem>>, vector<8x8xf32>
    tpu.vector_store %arg13[%c0_18, %c8], %55 {strides = array<i32>} : memref<8x32xf32, #tpu.memory_space<vmem>>, vector<8x8xf32>,
    %57 = vector.extract_strided_slice %10 {offsets = [0, 0, 16], sizes = [1, 8, 8], strides = [1, 1, 1]} : vector<1x8x32xbf16> to vector<1x8x8xbf16>
    %58 = vector.extract_strided_slice %13 {offsets = [0, 0, 16], sizes = [1, 8, 8], strides = [1, 1, 1]} : vector<1x8x32xbf16> to vector<1x8x8xbf16>
    %59 = vector.extract_strided_slice %16 {offsets = [0, 0, 16], sizes = [1, 8, 8], strides = [1, 1, 1]} : vector<1x8x32xbf16> to vector<1x8x8xbf16>
    "tpu.trace_start"() <{level = 10 : i32, message = "bqd,bkd->bqk"}> : () -> ()
    %cst_19 = arith.constant dense<0.000000e+00> : vector<1x8x8xf32>
    %60 = tpu.matmul %57, %58, %cst_19 {dimension_numbers = #tpu.dot_dimension_numbers<[2], [2], [1], [1], [0, 0, 0, 1, 1, 1], [0], [0]>} : vector<1x8x8xbf16>, vector<1x8x8xbf16>, vector<1x8x8xf32> -> vector<1x8x8xf32>
    "tpu.trace_stop"() : () -> ()
    %cst_20 = arith.constant 0.353553385 : f32
    %61 = vector.broadcast %cst_20 : f32 to vector<1x8x8xf32>
    %62 = arith.mulf %60, %61 : vector<1x8x8xf32>
    %cst_21 = arith.constant dense<0xFF800000> : vector<1x8xf32>
    %63 = vector.multi_reduction <maximumf>, %62, %cst_21 [2] : vector<1x8x8xf32> to vector<1x8xf32>
    %64 = vector.shape_cast %63 : vector<1x8xf32> to vector<1x8x1xf32>
    %65 = vector.broadcast %64 : vector<1x8x1xf32> to vector<1x8x8xf32>
    %66 = arith.subf %62, %65 : vector<1x8x8xf32>
    %67 = math.exp %66 : vector<1x8x8xf32>
    %cst_22 = arith.constant dense<0.000000e+00> : vector<1x8xf32>
    %68 = vector.multi_reduction <add>, %67, %cst_22 [2] : vector<1x8x8xf32> to vector<1x8xf32>
    %69 = vector.shape_cast %68 : vector<1x8xf32> to vector<1x8x1xf32>
    %70 = tpu.reciprocal %69 {approx = true} : vector<1x8x1xf32> -> vector<1x8x1xf32>
    %71 = vector.broadcast %70 : vector<1x8x1xf32> to vector<1x8x8xf32>
    %72 = arith.mulf %67, %71 : vector<1x8x8xf32>
    %73 = arith.truncf %72 : vector<1x8x8xf32> to vector<1x8x8xbf16>
    "tpu.trace_start"() <{level = 10 : i32, message = "bqk,bkd->bqd"}> : () -> ()
    %cst_23 = arith.constant dense<0.000000e+00> : vector<1x8x8xf32>
    %74 = tpu.matmul %73, %59, %cst_23 {dimension_numbers = #tpu.dot_dimension_numbers<[2], [1], [1], [2], [0, 0, 0, 1, 1, 2], [0], [0]>} : vector<1x8x8xbf16>, vector<1x8x8xbf16>, vector<1x8x8xf32> -> vector<1x8x8xf32>
    "tpu.trace_stop"() : () -> ()
    %75 = vector.shape_cast %74 : vector<1x8x8xf32> to vector<8x8xf32>
    %c0_24 = arith.constant 0 : index
    %c16 = arith.constant 16 : index
    %76 = vector.load %arg13[%c0_24, %c16] : memref<8x32xf32, #tpu.memory_space<vmem>>, vector<8x8xf32>
    tpu.vector_store %arg13[%c0_24, %c16], %75 {strides = array<i32>} : memref<8x32xf32, #tpu.memory_space<vmem>>, vector<8x8xf32>,
    %77 = vector.extract_strided_slice %10 {offsets = [0, 0, 24], sizes = [1, 8, 8], strides = [1, 1, 1]} : vector<1x8x32xbf16> to vector<1x8x8xbf16>
    %78 = vector.extract_strided_slice %13 {offsets = [0, 0, 24], sizes = [1, 8, 8], strides = [1, 1, 1]} : vector<1x8x32xbf16> to vector<1x8x8xbf16>
    %79 = vector.extract_strided_slice %16 {offsets = [0, 0, 24], sizes = [1, 8, 8], strides = [1, 1, 1]} : vector<1x8x32xbf16> to vector<1x8x8xbf16>
    "tpu.trace_start"() <{level = 10 : i32, message = "bqd,bkd->bqk"}> : () -> ()
    %cst_25 = arith.constant dense<0.000000e+00> : vector<1x8x8xf32>
    %80 = tpu.matmul %77, %78, %cst_25 {dimension_numbers = #tpu.dot_dimension_numbers<[2], [2], [1], [1], [0, 0, 0, 1, 1, 1], [0], [0]>} : vector<1x8x8xbf16>, vector<1x8x8xbf16>, vector<1x8x8xf32> -> vector<1x8x8xf32>
    "tpu.trace_stop"() : () -> ()
    %cst_26 = arith.constant 0.353553385 : f32
    %81 = vector.broadcast %cst_26 : f32 to vector<1x8x8xf32>
    %82 = arith.mulf %80, %81 : vector<1x8x8xf32>
    %cst_27 = arith.constant dense<0xFF800000> : vector<1x8xf32>
    %83 = vector.multi_reduction <maximumf>, %82, %cst_27 [2] : vector<1x8x8xf32> to vector<1x8xf32>
    %84 = vector.shape_cast %83 : vector<1x8xf32> to vector<1x8x1xf32>
    %85 = vector.broadcast %84 : vector<1x8x1xf32> to vector<1x8x8xf32>
    %86 = arith.subf %82, %85 : vector<1x8x8xf32>
    %87 = math.exp %86 : vector<1x8x8xf32>
    %cst_28 = arith.constant dense<0.000000e+00> : vector<1x8xf32>
    %88 = vector.multi_reduction <add>, %87, %cst_28 [2] : vector<1x8x8xf32> to vector<1x8xf32>
    %89 = vector.shape_cast %88 : vector<1x8xf32> to vector<1x8x1xf32>
    %90 = tpu.reciprocal %89 {approx = true} : vector<1x8x1xf32> -> vector<1x8x1xf32>
    %91 = vector.broadcast %90 : vector<1x8x1xf32> to vector<1x8x8xf32>
    %92 = arith.mulf %87, %91 : vector<1x8x8xf32>
    %93 = arith.truncf %92 : vector<1x8x8xf32> to vector<1x8x8xbf16>
    "tpu.trace_start"() <{level = 10 : i32, message = "bqk,bkd->bqd"}> : () -> ()
    %cst_29 = arith.constant dense<0.000000e+00> : vector<1x8x8xf32>
    %94 = tpu.matmul %93, %79, %cst_29 {dimension_numbers = #tpu.dot_dimension_numbers<[2], [1], [1], [2], [0, 0, 0, 1, 1, 2], [0], [0]>} : vector<1x8x8xbf16>, vector<1x8x8xbf16>, vector<1x8x8xf32> -> vector<1x8x8xf32>
    "tpu.trace_stop"() : () -> ()
    %95 = vector.shape_cast %94 : vector<1x8x8xf32> to vector<8x8xf32>
    %c0_30 = arith.constant 0 : index
    %c24 = arith.constant 24 : index
    %96 = vector.load %arg13[%c0_30, %c24] : memref<8x32xf32, #tpu.memory_space<vmem>>, vector<8x8xf32>
    tpu.vector_store %arg13[%c0_30, %c24], %95 {strides = array<i32>} : memref<8x32xf32, #tpu.memory_space<vmem>>, vector<8x8xf32>,
    %c0_31 = arith.constant 0 : index
    %c0_32 = arith.constant 0 : index
    %97 = vector.load %arg13[%c0_31, %c0_32] : memref<8x32xf32, #tpu.memory_space<vmem>>, vector<8x32xf32>
    %98 = arith.truncf %97 : vector<8x32xf32> to vector<8x32xbf16>
    %c0_33 = arith.constant 0 : index
    %c0_34 = arith.constant 0 : index
    %99 = vector.load %arg4[%c0_33, %c0_34] : memref<32x32xbf16, #tpu.memory_space<vmem>>, vector<32x32xbf16>
    %cst_35 = arith.constant dense<0.000000e+00> : vector<8x32xf32>
    %100 = tpu.matmul %98, %99, %cst_35 {dimension_numbers = #tpu.dot_dimension_numbers<[1], [0], [0], [1], [0, 0, 1, 1], [], []>} : vector<8x32xbf16>, vector<32x32xbf16>, vector<8x32xf32> -> vector<8x32xf32>
    %c0_36 = arith.constant 0 : index
    %c0_37 = arith.constant 0 : index
    %101 = vector.load %arg5[%c0_36, %c0_37] : memref<1x32xf32, #tpu.memory_space<vmem>>, vector<1x32xf32>
    %102 = vector.broadcast %101 : vector<1x32xf32> to vector<8x32xf32>
    %103 = arith.addf %100, %102 : vector<8x32xf32>
    %c0_38 = arith.constant 0 : index
    %c0_39 = arith.constant 0 : index
    %104 = vector.load %arg6[%c0_38, %c0_39] : memref<1x32xf32, #tpu.memory_space<vmem>>, vector<1x32xf32>
    %c0_40 = arith.constant 0 : index
    %c0_41 = arith.constant 0 : index
    %105 = vector.load %arg7[%c0_40, %c0_41] : memref<1x32xf32, #tpu.memory_space<vmem>>, vector<1x32xf32>
    %106 = arith.addf %1, %103 : vector<8x32xf32>
    %cst_42 = arith.constant dense<0.000000e+00> : vector<8xf32>
    %107 = vector.multi_reduction <add>, %106, %cst_42 [1] : vector<8x32xf32> to vector<8xf32>
    %108 = vector.shape_cast %107 : vector<8xf32> to vector<8x1xf32>
    %cst_43 = arith.constant 3.200000e+01 : f32
    %109 = vector.broadcast %cst_43 : f32 to vector<8x1xf32>
    %110 = arith.divf %108, %109 : vector<8x1xf32>
    %111 = vector.broadcast %110 : vector<8x1xf32> to vector<8x32xf32>
    %112 = arith.subf %106, %111 : vector<8x32xf32>
    %113 = arith.mulf %112, %112 : vector<8x32xf32>
    %cst_44 = arith.constant dense<0.000000e+00> : vector<8xf32>
    %114 = vector.multi_reduction <add>, %113, %cst_44 [1] : vector<8x32xf32> to vector<8xf32>
    %115 = vector.shape_cast %114 : vector<8xf32> to vector<8x1xf32>
    %cst_45 = arith.constant 0.0322580636 : f32
    %116 = vector.broadcast %cst_45 : f32 to vector<8x1xf32>
    %117 = arith.mulf %115, %116 : vector<8x1xf32>
    %118 = math.sqrt %117 : vector<8x1xf32>
    %cst_46 = arith.constant 9.99999997E-7 : f32
    %119 = vector.broadcast %cst_46 : f32 to vector<8x1xf32>
    %120 = arith.addf %118, %119 : vector<8x1xf32>
    %cst_47 = arith.constant 1.000000e+00 : f32
    %121 = vector.broadcast %cst_47 : f32 to vector<8x1xf32>
    %122 = arith.divf %121, %120 : vector<8x1xf32>
    %123 = vector.broadcast %104 : vector<1x32xf32> to vector<8x32xf32>
    %124 = arith.mulf %123, %112 : vector<8x32xf32>
    %125 = vector.broadcast %122 : vector<8x1xf32> to vector<8x32xf32>
    %126 = arith.mulf %124, %125 : vector<8x32xf32>
    %127 = vector.broadcast %105 : vector<1x32xf32> to vector<8x32xf32>
    %128 = arith.addf %126, %127 : vector<8x32xf32>
    %129 = arith.truncf %128 : vector<8x32xf32> to vector<8x32xbf16>
    %cst_48 = arith.constant 0.000000e+00 : f32
    %130 = vector.broadcast %cst_48 : f32 to vector<8x32xf32>
    %c0_i32 = arith.constant 0 : i32
    %131 = arith.index_cast %c0_i32 : i32 to index
    %c0_49 = arith.constant 0 : index
    %c0_50 = arith.constant 0 : index
    %132 = vector.load %arg8[%131, %c0_49, %c0_50] : memref<1x32x128xbf16, #tpu.memory_space<vmem>>, vector<1x32x128xbf16>
    %133 = vector.shape_cast %132 : vector<1x32x128xbf16> to vector<32x128xbf16>
    %cst_51 = arith.constant dense<0.000000e+00> : vector<8x128xf32>
    %134 = tpu.matmul %129, %133, %cst_51 {dimension_numbers = #tpu.dot_dimension_numbers<[1], [0], [0], [1], [0, 0, 1, 1], [], []>} : vector<8x32xbf16>, vector<32x128xbf16>, vector<8x128xf32> -> vector<8x128xf32>
    %135 = arith.index_cast %c0_i32 : i32 to index
    %c0_52 = arith.constant 0 : index
    %c0_53 = arith.constant 0 : index
    %136 = vector.load %arg9[%135, %c0_52, %c0_53] : memref<1x1x128xf32, #tpu.memory_space<vmem>>, vector<1x1x128xf32>
    %137 = vector.shape_cast %136 : vector<1x1x128xf32> to vector<1x128xf32>
    %138 = vector.broadcast %137 : vector<1x128xf32> to vector<8x128xf32>
    %139 = arith.addf %134, %138 : vector<8x128xf32>
    %cst_54 = arith.constant 0.000000e+00 : f32
    %140 = vector.broadcast %cst_54 : f32 to vector<8x128xf32>
    %141 = arith.maximumf %139, %140 : vector<8x128xf32>
    %142 = arith.truncf %141 : vector<8x128xf32> to vector<8x128xbf16>
    %143 = arith.index_cast %c0_i32 : i32 to index
    %c0_55 = arith.constant 0 : index
    %c0_56 = arith.constant 0 : index
    %144 = vector.load %arg10[%143, %c0_55, %c0_56] : memref<1x128x32xbf16, #tpu.memory_space<vmem>>, vector<1x128x32xbf16>
    %145 = vector.shape_cast %144 : vector<1x128x32xbf16> to vector<128x32xbf16>
    %cst_57 = arith.constant dense<0.000000e+00> : vector<8x32xf32>
    %146 = tpu.matmul %142, %145, %cst_57 {dimension_numbers = #tpu.dot_dimension_numbers<[1], [0], [0], [1], [0, 0, 1, 1], [], []>} : vector<8x128xbf16>, vector<128x32xbf16>, vector<8x32xf32> -> vector<8x32xf32>
    %147 = arith.addf %130, %146 : vector<8x32xf32>
    %c1_i32 = arith.constant 1 : i32
    %c0_58 = arith.constant 0 : index
    %c0_59 = arith.constant 0 : index
    %148 = vector.load %arg11[%c0_58, %c0_59] : memref<1x32xf32, #tpu.memory_space<vmem>>, vector<1x32xf32>
    %149 = vector.broadcast %148 : vector<1x32xf32> to vector<8x32xf32>
    %150 = arith.addf %147, %149 : vector<8x32xf32>
    %151 = arith.addf %128, %150 : vector<8x32xf32>
    %cst_60 = arith.constant dense<0.000000e+00> : vector<8xf32>
    %152 = vector.multi_reduction <add>, %151, %cst_60 [1] : vector<8x32xf32> to vector<8xf32>
    %153 = vector.shape_cast %152 : vector<8xf32> to vector<8x1xf32>
    %cst_61 = arith.constant 3.200000e+01 : f32
    %154 = vector.broadcast %cst_61 : f32 to vector<8x1xf32>
    %155 = arith.divf %153, %154 : vector<8x1xf32>
    %156 = vector.broadcast %155 : vector<8x1xf32> to vector<8x32xf32>
    %157 = arith.subf %151, %156 : vector<8x32xf32>
    %158 = arith.mulf %157, %157 : vector<8x32xf32>
    %cst_62 = arith.constant dense<0.000000e+00> : vector<8xf32>
    %159 = vector.multi_reduction <add>, %158, %cst_62 [1] : vector<8x32xf32> to vector<8xf32>
    %160 = vector.shape_cast %159 : vector<8xf32> to vector<8x1xf32>
    %cst_63 = arith.constant 0.0322580636 : f32
    %161 = vector.broadcast %cst_63 : f32 to vector<8x1xf32>
    %162 = arith.mulf %160, %161 : vector<8x1xf32>
    %163 = math.sqrt %162 : vector<8x1xf32>
    %cst_64 = arith.constant 9.99999997E-7 : f32
    %164 = vector.broadcast %cst_64 : f32 to vector<8x1xf32>
    %165 = arith.addf %163, %164 : vector<8x1xf32>
    %cst_65 = arith.constant 1.000000e+00 : f32
    %166 = vector.broadcast %cst_65 : f32 to vector<8x1xf32>
    %167 = arith.divf %166, %165 : vector<8x1xf32>
    %168 = vector.broadcast %104 : vector<1x32xf32> to vector<8x32xf32>
    %169 = arith.mulf %168, %157 : vector<8x32xf32>
    %170 = vector.broadcast %167 : vector<8x1xf32> to vector<8x32xf32>
    %171 = arith.mulf %169, %170 : vector<8x32xf32>
    %172 = vector.broadcast %105 : vector<1x32xf32> to vector<8x32xf32>
    %173 = arith.addf %171, %172 : vector<8x32xf32>
    %174 = vector.shape_cast %173 : vector<8x32xf32> to vector<1x8x32xf32>
    %c0_66 = arith.constant 0 : index
    %c0_67 = arith.constant 0 : index
    %c0_68 = arith.constant 0 : index
    %175 = vector.load %arg12[%c0_66, %c0_67, %c0_68] : memref<1x8x32xf32, #tpu.memory_space<vmem>>, vector<1x8x32xf32>
    tpu.vector_store %arg12[%c0_66, %c0_67, %c0_68], %174 {strides = array<i32>} : memref<1x8x32xf32, #tpu.memory_space<vmem>>, vector<1x8x32xf32>,
    return
  }
  func.func @transform_0(%arg0: i32) -> (i32, i32, i32) {
    %c0_i32 = arith.constant 0 : i32
    %c0_i32_0 = arith.constant 0 : i32
    %c0_i32_1 = arith.constant 0 : i32
    return %arg0, %c0_i32, %c0_i32_0 : i32, i32, i32
  }
  func.func @transform_1(%arg0: i32) -> (i32, i32) {
    %c0_i32 = arith.constant 0 : i32
    %c0_i32_0 = arith.constant 0 : i32
    %c0_i32_1 = arith.constant 0 : i32
    return %c0_i32, %c0_i32_0 : i32, i32
  }
  func.func @transform_2(%arg0: i32) -> (i32, i32) {
    %c0_i32 = arith.constant 0 : i32
    %c0_i32_0 = arith.constant 0 : i32
    %c0_i32_1 = arith.constant 0 : i32
    return %c0_i32, %c0_i32_0 : i32, i32
  }
  func.func @transform_3(%arg0: i32) -> (i32, i32) {
    %c0_i32 = arith.constant 0 : i32
    %c0_i32_0 = arith.constant 0 : i32
    %c0_i32_1 = arith.constant 0 : i32
    return %c0_i32, %c0_i32_0 : i32, i32
  }
  func.func @transform_4(%arg0: i32) -> (i32, i32) {
    %c0_i32 = arith.constant 0 : i32
    %c0_i32_0 = arith.constant 0 : i32
    %c0_i32_1 = arith.constant 0 : i32
    return %c0_i32, %c0_i32_0 : i32, i32
  }
  func.func @transform_5(%arg0: i32) -> (i32, i32) {
    %c0_i32 = arith.constant 0 : i32
    %c0_i32_0 = arith.constant 0 : i32
    %c0_i32_1 = arith.constant 0 : i32
    return %c0_i32, %c0_i32_0 : i32, i32
  }
  func.func @transform_6(%arg0: i32) -> (i32, i32) {
    %c0_i32 = arith.constant 0 : i32
    %c0_i32_0 = arith.constant 0 : i32
    %c0_i32_1 = arith.constant 0 : i32
    return %c0_i32, %c0_i32_0 : i32, i32
  }
  func.func @transform_7(%arg0: i32) -> (i32, i32, i32) {
    %c0_i32 = arith.constant 0 : i32
    %c0_i32_0 = arith.constant 0 : i32
    %c0_i32_1 = arith.constant 0 : i32
    %c0_i32_2 = arith.constant 0 : i32
    return %c0_i32, %c0_i32_0, %c0_i32_1 : i32, i32, i32
  }
  func.func @transform_8(%arg0: i32) -> (i32, i32, i32) {
    %c0_i32 = arith.constant 0 : i32
    %c0_i32_0 = arith.constant 0 : i32
    %c0_i32_1 = arith.constant 0 : i32
    %c0_i32_2 = arith.constant 0 : i32
    return %c0_i32, %c0_i32_0, %c0_i32_1 : i32, i32, i32
  }
  func.func @transform_9(%arg0: i32) -> (i32, i32, i32) {
    %c0_i32 = arith.constant 0 : i32
    %c0_i32_0 = arith.constant 0 : i32
    %c0_i32_1 = arith.constant 0 : i32
    %c0_i32_2 = arith.constant 0 : i32
    return %c0_i32, %c0_i32_0, %c0_i32_1 : i32, i32, i32
  }
  func.func @transform_10(%arg0: i32) -> (i32, i32) {
    %c0_i32 = arith.constant 0 : i32
    %c0_i32_0 = arith.constant 0 : i32
    %c0_i32_1 = arith.constant 0 : i32
    return %c0_i32, %c0_i32_0 : i32, i32
  }
  func.func @transform_11(%arg0: i32) -> (i32, i32, i32) {
    %c0_i32 = arith.constant 0 : i32
    %c0_i32_0 = arith.constant 0 : i32
    %c0_i32_1 = arith.constant 0 : i32
    return %arg0, %c0_i32, %c0_i32_0 : i32, i32, i32
  }
}

</mosaic_0001>

<llo_original>
// kernel: tpu_custom_call.1
$region0: #{tpu_custom_call.1}
  #allocation0 [shape = 'u32[]', space=smem, size = 0x4, offset = 0x4, fixed_abs, tag = 'smem constant byte address 0x4 - core index']
  #allocation1 [shape = 'u32[144,128]{1,0:T(1,128)}', space=vmem, size = 0x12000, scoped, tag = 'internal scratch']
  #allocation2 [shape = 'f32[8,32]{1,0:T(8,128)}', space=vmem, size = 0x1000, scoped, tag = 'scratch operand']
  %s0 = inlined_call_operand.vmem [shape: f32[2,8,32], index: 0, kind: input, shape index: {}]
  %s1 = inlined_call_operand.vmem [shape: bf16[32,96], index: 1, kind: input, shape index: {}]
  %s2 = inlined_call_operand.vmem [shape: f32[1,96], index: 2, kind: input, shape index: {}]
  %s3 = inlined_call_operand.vmem [shape: bf16[32,32], index: 3, kind: input, shape index: {}]
  %s4 = inlined_call_operand.vmem [shape: f32[1,32], index: 4, kind: input, shape index: {}]
  %s5 = inlined_call_operand.vmem [shape: f32[1,32], index: 5, kind: input, shape index: {}]
  %s6 = inlined_call_operand.vmem [shape: f32[1,32], index: 6, kind: input, shape index: {}]
  %s7 = inlined_call_operand.vmem [shape: bf16[1,32,128], index: 7, kind: input, shape index: {}]
  %s8 = inlined_call_operand.vmem [shape: f32[1,1,128], index: 8, kind: input, shape index: {}]
  %s9 = inlined_call_operand.vmem [shape: bf16[1,128,32], index: 9, kind: input, shape index: {}]
  %s10 = inlined_call_operand.vmem [shape: f32[1,32], index: 10, kind: input, shape index: {}]
  %s11 = inlined_call_operand.hbm [shape: f32[2,8,32], index: 11, kind: output, shape index: {}]
  %s12 = sld [smem:[#allocation0]]
  $region77: #{tpu_custom_call.1} parent=0
    _
  %s14 = ssub.s32 1, %s12
  %s15 = scalar_select 0, %s14, %s12
  $region1: #{tpu_custom_call.1} parent=0
    #allocation3 [shape = 'u8[8192]{0}', space=vmem, size = 0x2000, scoped, tag = 'output window, operand 0']
    #allocation4 [shape = 's32[2]{0}', space=sflag, size = 0x8, scoped, tag = 'scoped memory for tpu_custom_call.1']
    %16 = vsyncpa [#allocation4], 0
    %s17 = scalar_lea.sflag [#allocation4], 1
    %18 = vsyncpa %s17, 0
    loop: start=0, step=1, limit=4
    $region2: #{tpu_custom_call.1} parent=1 // loop_pre_header
      _
    $region3: #{tpu_custom_call.1} parent=1 // loop_header
      %s20 = sphi 0, %s24
      %p21 = scmp.ge.s32.totalorder %s20, 4
      %s30 = sphi 0, %s32
      %s33 = sphi 0, %s30
      %s34 = sphi 0, %s33
      %s50 = sphi 0, %s34
      %s54 = sphi 0, %s54
      %s56 = sphi 0, %s54
      %s57 = sphi 0, %s56
      %s71 = sphi 0, %s57
      %s75 = sphi 0, %s75
      %s77 = sphi 0, %s75
      %s78 = sphi 0, %s77
      %s92 = sphi 0, %s78
      %s96 = sphi 0, %s96
      %s98 = sphi 0, %s96
      %s99 = sphi 0, %s98
      %s113 = sphi 0, %s99
      %s117 = sphi 0, %s117
      %s119 = sphi 0, %s117
      %s120 = sphi 0, %s119
      %s134 = sphi 0, %s120
      %s138 = sphi 0, %s138
      %s140 = sphi 0, %s138
      %s141 = sphi 0, %s140
      %s155 = sphi 0, %s141
      %s159 = sphi 0, %s159
      %s161 = sphi 0, %s159
      %s162 = sphi 0, %s161
      %s176 = sphi 0, %s162
      %s180 = sphi 0, %s180
      %s182 = sphi 0, %s180
      %s183 = sphi 0, %s182
      %s197 = sphi 0, %s183
      %s201 = sphi 0, %s201
      %s203 = sphi 0, %s201
      %s204 = sphi 0, %s203
      %s218 = sphi 0, %s204
      %s222 = sphi 0, %s222
      %s224 = sphi 0, %s222
      %s225 = sphi 0, %s224
      %s239 = sphi 0, %s225
      %s243 = sphi 0, %s243
      %s245 = sphi 0, %s243
      %s246 = sphi 0, %s245
      %s260 = sphi 0, %s246
      %s266 = sphi 0, %s268
      %s269 = sphi 0, %s266
      %s270 = sphi 0, %s269
      %s286 = sphi 0, %s270
    $region4: #{tpu_custom_call.1} parent=1 // loop_header_branch
      %23 = sbr.rel (%p21) target = $region8
    $region5: #{tpu_custom_call.1} parent=1 // loop_body
      %s25 = ssub.s32 %s20, 1
      %s26 = ssub.s32 %s20, 2
      %s27 = sadd.s32 %s20, 1
      %s28 = ssub.s32 %s20, %s27
      %p29 = scmp.eq.s32.totalorder %s28, 0
      %s31 = sadd.s32 %s30, 1
      %s32 = scalar_select %p29, %s30, %s31
      %p35 = pneg %p29
      %p36 = scmp.eq.s32.totalorder %s20, 1
      %p37 = por %p35, %p36
      %p38 = scmp.ne.s32.totalorder %s30, %s33
      %p39 = scmp.eq.s32.totalorder %s20, 0
      %p40 = por %p38, %p39
      %p41 = scmp.ne.s32.totalorder %s30, %s33
      %p42 = scmp.eq.s32.totalorder %s25, 1
      %p43 = por %p41, %p42
      %p44 = scmp.ne.s32.totalorder %s33, %s34
      %p45 = scmp.eq.s32.totalorder %s25, 0
      %p46 = por %p44, %p45
      %p47 = scmp.ne.s32.totalorder %s33, %s34
      %p48 = scmp.eq.s32.totalorder %s26, 1
      %p49 = por %p47, %p48
      %p51 = scmp.ne.s32.totalorder %s34, %s50
      %p52 = scmp.eq.s32.totalorder %s26, 0
      %p53 = por %p51, %p52
      %s55 = sadd.s32 %s54, 1
      %p58 = scmp.eq.s32.totalorder %s20, 1
      %p59 = scmp.ne.s32.totalorder %s54, %s56
      %p60 = scmp.eq.s32.totalorder %s20, 0
      %p61 = por %p59, %p60
      %p62 = scmp.ne.s32.totalorder %s54, %s56
      %p63 = scmp.eq.s32.totalorder %s25, 1
      %p64 = por %p62, %p63
      %p65 = scmp.ne.s32.totalorder %s56, %s57
      %p66 = scmp.eq.s32.totalorder %s25, 0
      %p67 = por %p65, %p66
      %p68 = scmp.ne.s32.totalorder %s56, %s57
      %p69 = scmp.eq.s32.totalorder %s26, 1
      %p70 = por %p68, %p69
      %p72 = scmp.ne.s32.totalorder %s57, %s71
      %p73 = scmp.eq.s32.totalorder %s26, 0
      %p74 = por %p72, %p73
      %s76 = sadd.s32 %s75, 1
      %p79 = scmp.eq.s32.totalorder %s20, 1
      %p80 = scmp.ne.s32.totalorder %s75, %s77
      %p81 = scmp.eq.s32.totalorder %s20, 0
      %p82 = por %p80, %p81
      %p83 = scmp.ne.s32.totalorder %s75, %s77
      %p84 = scmp.eq.s32.totalorder %s25, 1
      %p85 = por %p83, %p84
      %p86 = scmp.ne.s32.totalorder %s77, %s78
      %p87 = scmp.eq.s32.totalorder %s25, 0
      %p88 = por %p86, %p87
      %p89 = scmp.ne.s32.totalorder %s77, %s78
      %p90 = scmp.eq.s32.totalorder %s26, 1
      %p91 = por %p89, %p90
      %p93 = scmp.ne.s32.totalorder %s78, %s92
      %p94 = scmp.eq.s32.totalorder %s26, 0
      %p95 = por %p93, %p94
      %s97 = sadd.s32 %s96, 1
      %p100 = scmp.eq.s32.totalorder %s20, 1
      %p101 = scmp.ne.s32.totalorder %s96, %s98
      %p102 = scmp.eq.s32.totalorder %s20, 0
      %p103 = por %p101, %p102
      %p104 = scmp.ne.s32.totalorder %s96, %s98
      %p105 = scmp.eq.s32.totalorder %s25, 1
      %p106 = por %p104, %p105
      %p107 = scmp.ne.s32.totalorder %s98, %s99
      %p108 = scmp.eq.s32.totalorder %s25, 0
      %p109 = por %p107, %p108
      %p110 = scmp.ne.s32.totalorder %s98, %s99
      %p111 = scmp.eq.s32.totalorder %s26, 1
      %p112 = por %p110, %p111
      %p114 = scmp.ne.s32.totalorder %s99, %s113
      %p115 = scmp.eq.s32.totalorder %s26, 0
      %p116 = por %p114, %p115
      %s118 = sadd.s32 %s117, 1
      %p121 = scmp.eq.s32.totalorder %s20, 1
      %p122 = scmp.ne.s32.totalorder %s117, %s119
      %p123 = scmp.eq.s32.totalorder %s20, 0
      %p124 = por %p122, %p123
      %p125 = scmp.ne.s32.totalorder %s117, %s119
      %p126 = scmp.eq.s32.totalorder %s25, 1
      %p127 = por %p125, %p126
      %p128 = scmp.ne.s32.totalorder %s119, %s120
      %p129 = scmp.eq.s32.totalorder %s25, 0
      %p130 = por %p128, %p129
      %p131 = scmp.ne.s32.totalorder %s119, %s120
      %p132 = scmp.eq.s32.totalorder %s26, 1
      %p133 = por %p131, %p132
      %p135 = scmp.ne.s32.totalorder %s120, %s134
      %p136 = scmp.eq.s32.totalorder %s26, 0
      %p137 = por %p135, %p136
      %s139 = sadd.s32 %s138, 1
      %p142 = scmp.eq.s32.totalorder %s20, 1
      %p143 = scmp.ne.s32.totalorder %s138, %s140
      %p144 = scmp.eq.s32.totalorder %s20, 0
      %p145 = por %p143, %p144
      %p146 = scmp.ne.s32.totalorder %s138, %s140
      %p147 = scmp.eq.s32.totalorder %s25, 1
      %p148 = por %p146, %p147
      %p149 = scmp.ne.s32.totalorder %s140, %s141
      %p150 = scmp.eq.s32.totalorder %s25, 0
      %p151 = por %p149, %p150
      %p152 = scmp.ne.s32.totalorder %s140, %s141
      %p153 = scmp.eq.s32.totalorder %s26, 1
      %p154 = por %p152, %p153
      %p156 = scmp.ne.s32.totalorder %s141, %s155
      %p157 = scmp.eq.s32.totalorder %s26, 0
      %p158 = por %p156, %p157
      %s160 = sadd.s32 %s159, 1
      %p163 = scmp.eq.s32.totalorder %s20, 1
      %p164 = scmp.ne.s32.totalorder %s159, %s161
      %p165 = scmp.eq.s32.totalorder %s20, 0
      %p166 = por %p164, %p165
      %p167 = scmp.ne.s32.totalorder %s159, %s161
      %p168 = scmp.eq.s32.totalorder %s25, 1
      %p169 = por %p167, %p168
      %p170 = scmp.ne.s32.totalorder %s161, %s162
      %p171 = scmp.eq.s32.totalorder %s25, 0
      %p172 = por %p170, %p171
      %p173 = scmp.ne.s32.totalorder %s161, %s162
      %p174 = scmp.eq.s32.totalorder %s26, 1
      %p175 = por %p173, %p174
      %p177 = scmp.ne.s32.totalorder %s162, %s176
      %p178 = scmp.eq.s32.totalorder %s26, 0
      %p179 = por %p177, %p178
      %s181 = sadd.s32 %s180, 1
      %p184 = scmp.eq.s32.totalorder %s20, 1
      %p185 = scmp.ne.s32.totalorder %s180, %s182
      %p186 = scmp.eq.s32.totalorder %s20, 0
      %p187 = por %p185, %p186
      %p188 = scmp.ne.s32.totalorder %s180, %s182
      %p189 = scmp.eq.s32.totalorder %s25, 1
      %p190 = por %p188, %p189
      %p191 = scmp.ne.s32.totalorder %s182, %s183
      %p192 = scmp.eq.s32.totalorder %s25, 0
      %p193 = por %p191, %p192
      %p194 = scmp.ne.s32.totalorder %s182, %s183
      %p195 = scmp.eq.s32.totalorder %s26, 1
      %p196 = por %p194, %p195
      %p198 = scmp.ne.s32.totalorder %s183, %s197
      %p199 = scmp.eq.s32.totalorder %s26, 0
      %p200 = por %p198, %p199
      %s202 = sadd.s32 %s201, 1
      %p205 = scmp.eq.s32.totalorder %s20, 1
      %p206 = scmp.ne.s32.totalorder %s201, %s203
      %p207 = scmp.eq.s32.totalorder %s20, 0
      %p208 = por %p206, %p207
      %p209 = scmp.ne.s32.totalorder %s201, %s203
      %p210 = scmp.eq.s32.totalorder %s25, 1
      %p211 = por %p209, %p210
      %p212 = scmp.ne.s32.totalorder %s203, %s204
      %p213 = scmp.eq.s32.totalorder %s25, 0
      %p214 = por %p212, %p213
      %p215 = scmp.ne.s32.totalorder %s203, %s204
      %p216 = scmp.eq.s32.totalorder %s26, 1
      %p217 = por %p215, %p216
      %p219 = scmp.ne.s32.totalorder %s204, %s218
      %p220 = scmp.eq.s32.totalorder %s26, 0
      %p221 = por %p219, %p220
      %s223 = sadd.s32 %s222, 1
      %p226 = scmp.eq.s32.totalorder %s20, 1
      %p227 = scmp.ne.s32.totalorder %s222, %s224
      %p228 = scmp.eq.s32.totalorder %s20, 0
      %p229 = por %p227, %p228
      %p230 = scmp.ne.s32.totalorder %s222, %s224
      %p231 = scmp.eq.s32.totalorder %s25, 1
      %p232 = por %p230, %p231
      %p233 = scmp.ne.s32.totalorder %s224, %s225
      %p234 = scmp.eq.s32.totalorder %s25, 0
      %p235 = por %p233, %p234
      %p236 = scmp.ne.s32.totalorder %s224, %s225
      %p237 = scmp.eq.s32.totalorder %s26, 1
      %p238 = por %p236, %p237
      %p240 = scmp.ne.s32.totalorder %s225, %s239
      %p241 = scmp.eq.s32.totalorder %s26, 0
      %p242 = por %p240, %p241
      %s244 = sadd.s32 %s243, 1
      %p247 = scmp.eq.s32.totalorder %s20, 1
      %p248 = scmp.ne.s32.totalorder %s243, %s245
      %p249 = scmp.eq.s32.totalorder %s20, 0
      %p250 = por %p248, %p249
      %p251 = scmp.ne.s32.totalorder %s243, %s245
      %p252 = scmp.eq.s32.totalorder %s25, 1
      %p253 = por %p251, %p252
      %p254 = scmp.ne.s32.totalorder %s245, %s246
      %p255 = scmp.eq.s32.totalorder %s25, 0
      %p256 = por %p254, %p255
      %p257 = scmp.ne.s32.totalorder %s245, %s246
      %p258 = scmp.eq.s32.totalorder %s26, 1
      %p259 = por %p257, %p258
      %p261 = scmp.ne.s32.totalorder %s246, %s260
      %p262 = scmp.eq.s32.totalorder %s26, 0
      %p263 = por %p261, %p262
      %s264 = ssub.s32 %s20, %s27
      %p265 = scmp.eq.s32.totalorder %s264, 0
      %s267 = sadd.s32 %s266, 1
      %s268 = scalar_select %p265, %s266, %s267
      %p271 = pneg %p265
      %p272 = scmp.eq.s32.totalorder %s20, 1
      %p273 = por %p271, %p272
      %p274 = scmp.ne.s32.totalorder %s266, %s269
      %p275 = scmp.eq.s32.totalorder %s20, 0
      %p276 = por %p274, %p275
      %p277 = scmp.ne.s32.totalorder %s266, %s269
      %p278 = scmp.eq.s32.totalorder %s25, 1
      %p279 = por %p277, %p278
      %p280 = scmp.ne.s32.totalorder %s269, %s270
      %p281 = scmp.eq.s32.totalorder %s25, 0
      %p282 = por %p280, %p281
      %p283 = scmp.ne.s32.totalorder %s269, %s270
      %p284 = scmp.eq.s32.totalorder %s26, 1
      %p285 = por %p283, %p284
      %p287 = scmp.ne.s32.totalorder %s270, %s286
      %p288 = scmp.eq.s32.totalorder %s26, 0
      %p289 = por %p287, %p288
      %p290 = scmp.le.s32.totalorder 1, %s20
      %p291 = scmp.lt.s32.totalorder %s20, 3
      %p292 = pnand %p290, %p291
      %p293 = pneg %p292
      // Predicated region
      $region9: #{tpu_custom_call.1} parent=5 // pred_check
        _
      $region10: #{tpu_custom_call.1} parent=5 // pred_check_branch
        %295 = sbr.rel (%p292) target = $region12
      $region11: #{tpu_custom_call.1} parent=5 // pred_region
        %s296 = ssub.s32 %s20, 1
        // Predicated region
        $region13: #{tpu_custom_call.1} parent=11 // pred_check
          %p297 = pneg %p67
        $region14: #{tpu_custom_call.1} parent=11 // pred_check_branch
          %299 = sbr.rel (%p297) target = $region16
        $region15: #{tpu_custom_call.1} parent=11 // pred_region
          _
        $region16: #{tpu_custom_call.1} parent=11 // pred_fallthru
          _
        // Predicated region
        $region17: #{tpu_custom_call.1} parent=11 // pred_check
          %p300 = pneg %p88
        $region18: #{tpu_custom_call.1} parent=11 // pred_check_branch
          %302 = sbr.rel (%p300) target = $region20
        $region19: #{tpu_custom_call.1} parent=11 // pred_region
          _
        $region20: #{tpu_custom_call.1} parent=11 // pred_fallthru
          _
        // Predicated region
        $region21: #{tpu_custom_call.1} parent=11 // pred_check
          %p303 = pneg %p109
        $region22: #{tpu_custom_call.1} parent=11 // pred_check_branch
          %305 = sbr.rel (%p303) target = $region24
        $region23: #{tpu_custom_call.1} parent=11 // pred_region
          _
        $region24: #{tpu_custom_call.1} parent=11 // pred_fallthru
          _
        // Predicated region
        $region25: #{tpu_custom_call.1} parent=11 // pred_check
          %p306 = pneg %p130
        $region26: #{tpu_custom_call.1} parent=11 // pred_check_branch
          %308 = sbr.rel (%p306) target = $region28
        $region27: #{tpu_custom_call.1} parent=11 // pred_region
          _
        $region28: #{tpu_custom_call.1} parent=11 // pred_fallthru
          _
        // Predicated region
        $region29: #{tpu_custom_call.1} parent=11 // pred_check
          %p309 = pneg %p151
        $region30: #{tpu_custom_call.1} parent=11 // pred_check_branch
          %311 = sbr.rel (%p309) target = $region32
        $region31: #{tpu_custom_call.1} parent=11 // pred_region
          _
        $region32: #{tpu_custom_call.1} parent=11 // pred_fallthru
          _
        // Predicated region
        $region33: #{tpu_custom_call.1} parent=11 // pred_check
          %p312 = pneg %p172
        $region34: #{tpu_custom_call.1} parent=11 // pred_check_branch
          %314 = sbr.rel (%p312) target = $region36
        $region35: #{tpu_custom_call.1} parent=11 // pred_region
          _
        $region36: #{tpu_custom_call.1} parent=11 // pred_fallthru
          _
        // Predicated region
        $region37: #{tpu_custom_call.1} parent=11 // pred_check
          %p315 = pneg %p193
        $region38: #{tpu_custom_call.1} parent=11 // pred_check_branch
          %317 = sbr.rel (%p315) target = $region40
        $region39: #{tpu_custom_call.1} parent=11 // pred_region
          _
        $region40: #{tpu_custom_call.1} parent=11 // pred_fallthru
          _
        // Predicated region
        $region41: #{tpu_custom_call.1} parent=11 // pred_check
          %p318 = pneg %p214
        $region42: #{tpu_custom_call.1} parent=11 // pred_check_branch
          %320 = sbr.rel (%p318) target = $region44
        $region43: #{tpu_custom_call.1} parent=11 // pred_region
          _
        $region44: #{tpu_custom_call.1} parent=11 // pred_fallthru
          _
        // Predicated region
        $region45: #{tpu_custom_call.1} parent=11 // pred_check
          %p321 = pneg %p235
        $region46: #{tpu_custom_call.1} parent=11 // pred_check_branch
          %323 = sbr.rel (%p321) target = $region48
        $region47: #{tpu_custom_call.1} parent=11 // pred_region
          _
        $region48: #{tpu_custom_call.1} parent=11 // pred_fallthru
          _
        // Predicated region
        $region49: #{tpu_custom_call.1} parent=11 // pred_check
          %p324 = pneg %p256
        $region50: #{tpu_custom_call.1} parent=11 // pred_check_branch
          %326 = sbr.rel (%p324) target = $region52
        $region51: #{tpu_custom_call.1} parent=11 // pred_region
          _
        $region52: #{tpu_custom_call.1} parent=11 // pred_fallthru
          _
      $region12: #{tpu_custom_call.1} parent=5 // pred_fallthru
        _
      %p327 = scmp.lt.s32.totalorder %s20, 2
      // Predicated region
      $region53: #{tpu_custom_call.1} parent=5 // pred_check
        %p328 = pneg %p327
      $region54: #{tpu_custom_call.1} parent=5 // pred_check_branch
        %330 = sbr.rel (%p328) target = $region56
      $region55: #{tpu_custom_call.1} parent=5 // pred_region
        // Predicated region
        $region57: #{tpu_custom_call.1} parent=55 // pred_check
          %p331 = pneg %p40
        $region58: #{tpu_custom_call.1} parent=55 // pred_check_branch
          %333 = sbr.rel (%p331) target = $region60
        $region59: #{tpu_custom_call.1} parent=55 // pred_region
          %p334 = scmp.lt.s32.totalorder %s20, 1
          %s335 = scalar_select %p334, %s20, 1
          %s336 = smul.addr %s335, 8
          %s337 = scalar_lea.vmem %s0, %s336
        $region60: #{tpu_custom_call.1} parent=55 // pred_fallthru
          _
      $region56: #{tpu_custom_call.1} parent=5 // pred_fallthru
        _
      %p338 = scmp.le.s32.totalorder 1, %s20
      %p339 = scmp.lt.s32.totalorder %s20, 3
      %p340 = pnand %p338, %p339
      %p341 = pneg %p340
      // Predicated region
      $region61: #{tpu_custom_call.1} parent=5 // pred_check
        _
      $region62: #{tpu_custom_call.1} parent=5 // pred_check_branch
        %343 = sbr.rel (%p340) target = $region64
      $region63: #{tpu_custom_call.1} parent=5 // pred_region
        %s344 = ssub.s32 %s20, 1
        %p345 = scmp.lt.s32.totalorder %s25, 1
        %s346 = scalar_select %p345, %s25, 1
        %s347 = smul.addr %s346, 8
        %s348 = scalar_lea.vmem %s0, %s347
        %p349 = pneg %p46
        %p350 = pneg %p43
        %p351 = pneg %p67
        %p352 = pneg %p64
        %p353 = pneg %p88
        %p354 = pneg %p85
        %p355 = pneg %p109
        %p356 = pneg %p106
        %p357 = pneg %p130
        %p358 = pneg %p127
        %p359 = pneg %p151
        %p360 = pneg %p148
        %p361 = pneg %p172
        %p362 = pneg %p169
        %p363 = pneg %p193
        %p364 = pneg %p190
        %p365 = pneg %p214
        %p366 = pneg %p211
        %p367 = pneg %p235
        %p368 = pneg %p232
        %p369 = pneg %p256
        %p370 = pneg %p253
        %p371 = pneg %p282
        %p372 = pneg %p279
        %s373 = sand.u32 %s269, 1
        %s374 = scalar_lea.sflag [#allocation4], %s373
        %s375 = sand.u32 %s269, 1
        %s376 = smul.addr %s375, 8
        %s377 = scalar_lea.vmem [#allocation3], %s376
        %p378 = scmp.lt.s32.totalorder %s25, 1
        %s379 = scalar_select %p378, %s25, 1
        %s380 = smul.addr %s379, 8
        %s381 = scalar_lea.vmem %s0, %s380
        %v383 = vld [vmem:[%s381] sm:$0xff]
        %v384 = vpack.c.bf16 %v383, %v383
        %v385 = vld [vmem:[%s1] sm:$0xf]
        %v386 = vld [vmem:[%s1 + $0x4] sm:$0xf]
        %v387 = vld [vmem:[%s1 + $0x8] sm:$0xf]
        %v388 = vld [vmem:[%s1 + $0xc] sm:$0xf]
        %v389 = vld [vmem:[%s2] sm:$0x1]
        %v391 = vlaneseq
        %v392 = vshrl.u32 %v391, 7
        %v393 = vsub.s32 0, %v392
        %v394 = vrot.slane %v389, %v393
        %v400 = vunpack.c.l.b16 %v385
        %v401 = vunpack.c.l.b16 %v386
        %v402 = vunpack.c.l.b16 %v387
        %v403 = vunpack.c.l.b16 %v388
        %v404 = vpack.c.b16 %v401, %v400
        %v405 = vpack.c.b16 %v403, %v402
        %vm408 = vcmask 261120
        %v410 = vsel %vm408, %v384, 0
        %412 = vmatprep.subr.bf16.mxu0 0
        %413 = vmatpush1.bf16.msra.mxu0 0
        %414 = vmatprep.subr.bf16.mxu0 0
        %415 = vmatpush1.bf16.msra.mxu0 0
        %416 = vmatprep.subr.bf16.mxu0 0
        %417 = vmatpush1.bf16.msra.mxu0 0
        %418 = vmatprep.subr.bf16.mxu0 0
        %419 = vmatpush1.bf16.msra.mxu0 0
        %420 = vmatprep.subr.bf16.mxu0 0
        %421 = vmatpush1.bf16.msra.mxu0 0
        %422 = vmatprep.subr.bf16.mxu0 0
        %423 = vmatpush1.bf16.msra.mxu0 0
        %424 = vmatprep.subr.bf16.mxu0 0
        %425 = vmatpush1.bf16.msra.mxu0 %v405
        %426 = vmatprep.subr.bf16.mxu0 0
        %427 = vmatpush1.bf16.msra.mxu0 %v404
        %428 = vmatprep.subr.bf16.mxu0 0
        %429 = vmatpush2.bf16.msra.mxu0 0
        %430 = vmatprep.subr.bf16.mxu0 0
        %431 = vmatpush2.bf16.msra.mxu0 0
        %432 = vmatprep.subr.bf16.mxu0 0
        %433 = vmatpush2.bf16.msra.mxu0 0
        %434 = vmatprep.subr.bf16.mxu0 0
        %435 = vmatpush2.bf16.msra.mxu0 0
        %436 = vmatprep.subr.bf16.mxu0 0
        %437 = vmatpush2.bf16.msra.mxu0 0
        %438 = vmatprep.subr.bf16.mxu0 0
        %439 = vmatpush2.bf16.msra.mxu0 0
        %440 = vmatprep.subr.bf16.mxu0 0
        %441 = vmatpush2.bf16.msra.mxu0 0
        %442 = vmatprep.subr.bf16.mxu0 0
        %443 = vmatpush2.bf16.msra.mxu0 0
        %444 = vmatprep.mubr.bf16.mxu0 0
        %445 = vmatmul.mubr.bf16.gmra.mxu0 %v410
        %v446 = vpop.f32.mrf.mxu0
        %v447 = vadd.f32 %v394, %v446
        %v448 = vpop.f32.mrf.mxu0
        %v449 = vpop.f32.mrf.mxu0
        %v450 = vpop.f32.mrf.mxu0
        %451 = vdwg.mxu0
        %v452 = vpack.c.bf16 %v447, %v447
        %454 = vrot.lane.b32.xlu0 %v452, 96
        %v455 = vpop.permute.xlu0 %454
        %vm456 = vcmask 64512
        %v458 = vsel %vm456, %v452, 0
        %v461 = vsel %vm456, %v455, 0
        %463 = vmatprep.subr.bf16.mxu0 0
        %464 = vmatpush1.bf16.xpose.msra.mxu0 0
        %465 = vmatprep.subr.bf16.mxu0 0
        %466 = vmatpush1.bf16.xpose.msra.mxu0 0
        %467 = vmatprep.subr.bf16.mxu0 0
        %468 = vmatpush1.bf16.xpose.msra.mxu0 0
        %469 = vmatprep.subr.bf16.mxu0 0
        %470 = vmatpush1.bf16.xpose.msra.mxu0 0
        %471 = vmatprep.subr.bf16.mxu0 0
        %472 = vmatpush1.bf16.xpose.msra.mxu0 0
        %473 = vmatprep.subr.bf16.mxu0 0
        %474 = vmatpush1.bf16.xpose.msra.mxu0 0
        %475 = vmatprep.subr.bf16.mxu0 0
        %476 = vmatpush1.bf16.xpose.msra.mxu0 0
        %477 = vmatprep.subr.bf16.mxu0 0
        %478 = vmatpush1.bf16.xpose.msra.mxu0 %v461
        %479 = vmatprep.subr.bf16.mxu0 0
        %480 = vmatpush2.bf16.xpose.msra.mxu0 0
        %481 = vmatprep.subr.bf16.mxu0 0
        %482 = vmatpush2.bf16.xpose.msra.mxu0 0
        %483 = vmatprep.subr.bf16.mxu0 0
        %484 = vmatpush2.bf16.xpose.msra.mxu0 0
        %485 = vmatprep.subr.bf16.mxu0 0
        %486 = vmatpush2.bf16.xpose.msra.mxu0 0
        %487 = vmatprep.subr.bf16.mxu0 0
        %488 = vmatpush2.bf16.xpose.msra.mxu0 0
        %489 = vmatprep.subr.bf16.mxu0 0
        %490 = vmatpush2.bf16.xpose.msra.mxu0 0
        %491 = vmatprep.subr.bf16.mxu0 0
        %492 = vmatpush2.bf16.xpose.msra.mxu0 0
        %493 = vmatprep.subr.bf16.mxu0 0
        %494 = vmatpush2.bf16.xpose.msra.mxu0 0
        %495 = vmatprep.mubr.bf16.mxu0 0
        %496 = vmatmul.mubr.bf16.gmra.mxu0 %v458
        %v497 = vpop.f32.mrf.mxu0
        %v498 = vadd.f32 0.0, %v497
        %v499 = vpop.f32.mrf.mxu0
        %v500 = vpop.f32.mrf.mxu0
        %v501 = vpop.f32.mrf.mxu0
        %502 = vdwg.mxu0
        %v503 = vmul.f32 %v498, 0.35355338
        %v504 = vsel %vm456, %v503, -inf
        %505 = vmax.xlane.f32.xlu0 %v504
        %v506 = vpop.xlane.xlu0 %505
        %v507 = vsub.f32 %v503, %v506
        %v508 = vmul.f32 %v507, 1.442695
        %v509 = vpow.pop %v508
        %v510 = vsel %vm456, %v509, 0.0
        %511 = vadd.xlane.f32.xlu0 %v510
        %v512 = vpop.xlane.xlu0 %511
        %v513 = vrcp.pop %v512
        %v514 = vmul.f32 %v509, %v513
        %v515 = vpack.c.bf16 %v514, %v514
        %516 = vrot.lane.b32.xlu0 %v452, 64
        %v517 = vpop.permute.xlu0 %516
        %v519 = vsel %vm456, %v515, 0
        %vm521 = vcmask 1043456
        %v523 = vsel %vm521, %v517, 0
        %525 = vmatprep.subr.bf16.mxu0 0
        %526 = vmatpush1.bf16.msra.mxu0 0
        %527 = vmatprep.subr.bf16.mxu0 0
        %528 = vmatpush1.bf16.msra.mxu0 0
        %529 = vmatprep.subr.bf16.mxu0 0
        %530 = vmatpush1.bf16.msra.mxu0 0
        %531 = vmatprep.subr.bf16.mxu0 0
        %532 = vmatpush1.bf16.msra.mxu0 0
        %533 = vmatprep.subr.bf16.mxu0 0
        %534 = vmatpush1.bf16.msra.mxu0 0
        %535 = vmatprep.subr.bf16.mxu0 0
        %536 = vmatpush1.bf16.msra.mxu0 0
        %537 = vmatprep.subr.bf16.mxu0 0
        %538 = vmatpush1.bf16.msra.mxu0 0
        %539 = vmatprep.subr.bf16.mxu0 0
        %540 = vmatpush1.bf16.msra.mxu0 %v523
        %541 = vmatprep.subr.bf16.mxu0 0
        %542 = vmatpush2.bf16.msra.mxu0 0
        %543 = vmatprep.subr.bf16.mxu0 0
        %544 = vmatpush2.bf16.msra.mxu0 0
        %545 = vmatprep.subr.bf16.mxu0 0
        %546 = vmatpush2.bf16.msra.mxu0 0
        %547 = vmatprep.subr.bf16.mxu0 0
        %548 = vmatpush2.bf16.msra.mxu0 0
        %549 = vmatprep.subr.bf16.mxu0 0
        %550 = vmatpush2.bf16.msra.mxu0 0
        %551 = vmatprep.subr.bf16.mxu0 0
        %552 = vmatpush2.bf16.msra.mxu0 0
        %553 = vmatprep.subr.bf16.mxu0 0
        %554 = vmatpush2.bf16.msra.mxu0 0
        %555 = vmatprep.subr.bf16.mxu0 0
        %556 = vmatpush2.bf16.msra.mxu0 0
        %557 = vmatprep.mubr.bf16.mxu0 0
        %558 = vmatmul.mubr.bf16.gmra.mxu0 %v519
        %v559 = vpop.f32.mrf.mxu0
        %v560 = vadd.f32 0.0, %v559
        %v561 = vpop.f32.mrf.mxu0
        %v562 = vpop.f32.mrf.mxu0
        %v563 = vpop.f32.mrf.mxu0
        %564 = vdwg.mxu0
        %565 = vst.msk [vmem:[#allocation2] sm:$0xff] %vm456, %v560
        %566 = vrot.lane.b32.xlu0 %v452, 120
        %v567 = vpop.permute.xlu0 %566
        %568 = vrot.lane.b32.xlu0 %v452, 88
        %v569 = vpop.permute.xlu0 %568
        %v571 = vsel %vm456, %v567, 0
        %v574 = vsel %vm456, %v569, 0
        %576 = vmatprep.subr.bf16.mxu0 0
        %577 = vmatpush1.bf16.xpose.msra.mxu0 0
        %578 = vmatprep.subr.bf16.mxu0 0
        %579 = vmatpush1.bf16.xpose.msra.mxu0 0
        %580 = vmatprep.subr.bf16.mxu0 0
        %581 = vmatpush1.bf16.xpose.msra.mxu0 0
        %582 = vmatprep.subr.bf16.mxu0 0
        %583 = vmatpush1.bf16.xpose.msra.mxu0 0
        %584 = vmatprep.subr.bf16.mxu0 0
        %585 = vmatpush1.bf16.xpose.msra.mxu0 0
        %586 = vmatprep.subr.bf16.mxu0 0
        %587 = vmatpush1.bf16.xpose.msra.mxu0 0
        %588 = vmatprep.subr.bf16.mxu0 0
        %589 = vmatpush1.bf16.xpose.msra.mxu0 0
        %590 = vmatprep.subr.bf16.mxu0 0
        %591 = vmatpush1.bf16.xpose.msra.mxu0 %v574
        %592 = vmatprep.subr.bf16.mxu0 0
        %593 = vmatpush2.bf16.xpose.msra.mxu0 0
        %594 = vmatprep.subr.bf16.mxu0 0
        %595 = vmatpush2.bf16.xpose.msra.mxu0 0
        %596 = vmatprep.subr.bf16.mxu0 0
        %597 = vmatpush2.bf16.xpose.msra.mxu0 0
        %598 = vmatprep.subr.bf16.mxu0 0
        %599 = vmatpush2.bf16.xpose.msra.mxu0 0
        %600 = vmatprep.subr.bf16.mxu0 0
        %601 = vmatpush2.bf16.xpose.msra.mxu0 0
        %602 = vmatprep.subr.bf16.mxu0 0
        %603 = vmatpush2.bf16.xpose.msra.mxu0 0
        %604 = vmatprep.subr.bf16.mxu0 0
        %605 = vmatpush2.bf16.xpose.msra.mxu0 0
        %606 = vmatprep.subr.bf16.mxu0 0
        %607 = vmatpush2.bf16.xpose.msra.mxu0 0
        %608 = vmatprep.mubr.bf16.mxu0 0
        %609 = vmatmul.mubr.bf16.gmra.mxu0 %v571
        %v610 = vpop.f32.mrf.mxu0
        %v611 = vadd.f32 0.0, %v610
        %v612 = vpop.f32.mrf.mxu0
        %v613 = vpop.f32.mrf.mxu0
        %v614 = vpop.f32.mrf.mxu0
        %615 = vdwg.mxu0
        %v616 = vmul.f32 %v611, 0.35355338
        %v617 = vsel %vm456, %v616, -inf
        %618 = vmax.xlane.f32.xlu0 %v617
        %v619 = vpop.xlane.xlu0 %618
        %v620 = vsub.f32 %v616, %v619
        %v621 = vmul.f32 %v620, 1.442695
        %v622 = vpow.pop %v621
        %v623 = vsel %vm456, %v622, 0.0
        %624 = vadd.xlane.f32.xlu0 %v623
        %v625 = vpop.xlane.xlu0 %624
        %v626 = vrcp.pop %v625
        %v627 = vmul.f32 %v622, %v626
        %v628 = vpack.c.bf16 %v627, %v627
        %629 = vrot.lane.b32.xlu0 %v452, 56
        %v630 = vpop.permute.xlu0 %629
        %v632 = vsel %vm456, %v628, 0
        %v635 = vsel %vm521, %v630, 0
        %637 = vmatprep.subr.bf16.mxu0 0
        %638 = vmatpush1.bf16.msra.mxu0 0
        %639 = vmatprep.subr.bf16.mxu0 0
        %640 = vmatpush1.bf16.msra.mxu0 0
        %641 = vmatprep.subr.bf16.mxu0 0
        %642 = vmatpush1.bf16.msra.mxu0 0
        %643 = vmatprep.subr.bf16.mxu0 0
        %644 = vmatpush1.bf16.msra.mxu0 0
        %645 = vmatprep.subr.bf16.mxu0 0
        %646 = vmatpush1.bf16.msra.mxu0 0
        %647 = vmatprep.subr.bf16.mxu0 0
        %648 = vmatpush1.bf16.msra.mxu0 0
        %649 = vmatprep.subr.bf16.mxu0 0
        %650 = vmatpush1.bf16.msra.mxu0 0
        %651 = vmatprep.subr.bf16.mxu0 0
        %652 = vmatpush1.bf16.msra.mxu0 %v635
        %653 = vmatprep.subr.bf16.mxu0 0
        %654 = vmatpush2.bf16.msra.mxu0 0
        %655 = vmatprep.subr.bf16.mxu0 0
        %656 = vmatpush2.bf16.msra.mxu0 0
        %657 = vmatprep.subr.bf16.mxu0 0
        %658 = vmatpush2.bf16.msra.mxu0 0
        %659 = vmatprep.subr.bf16.mxu0 0
        %660 = vmatpush2.bf16.msra.mxu0 0
        %661 = vmatprep.subr.bf16.mxu0 0
        %662 = vmatpush2.bf16.msra.mxu0 0
        %663 = vmatprep.subr.bf16.mxu0 0
        %664 = vmatpush2.bf16.msra.mxu0 0
        %665 = vmatprep.subr.bf16.mxu0 0
        %666 = vmatpush2.bf16.msra.mxu0 0
        %667 = vmatprep.subr.bf16.mxu0 0
        %668 = vmatpush2.bf16.msra.mxu0 0
        %669 = vmatprep.mubr.bf16.mxu0 0
        %670 = vmatmul.mubr.bf16.gmra.mxu0 %v632
        %v671 = vpop.f32.mrf.mxu0
        %v672 = vadd.f32 0.0, %v671
        %v673 = vpop.f32.mrf.mxu0
        %v674 = vpop.f32.mrf.mxu0
        %v675 = vpop.f32.mrf.mxu0
        %676 = vdwg.mxu0
        %678 = vrot.lane.b32.xlu0 %v672, 8
        %v679 = vpop.permute.xlu0 %678
        %vm681 = vcmask 130112
        %682 = vst.msk [vmem:[#allocation2] sm:$0xff] %vm681, %v679
        %683 = vrot.lane.b32.xlu0 %v452, 112
        %v684 = vpop.permute.xlu0 %683
        %685 = vrot.lane.b32.xlu0 %v452, 80
        %v686 = vpop.permute.xlu0 %685
        %v688 = vsel %vm456, %v684, 0
        %v691 = vsel %vm456, %v686, 0
        %693 = vmatprep.subr.bf16.mxu0 0
        %694 = vmatpush1.bf16.xpose.msra.mxu0 0
        %695 = vmatprep.subr.bf16.mxu0 0
        %696 = vmatpush1.bf16.xpose.msra.mxu0 0
        %697 = vmatprep.subr.bf16.mxu0 0
        %698 = vmatpush1.bf16.xpose.msra.mxu0 0
        %699 = vmatprep.subr.bf16.mxu0 0
        %700 = vmatpush1.bf16.xpose.msra.mxu0 0
        %701 = vmatprep.subr.bf16.mxu0 0
        %702 = vmatpush1.bf16.xpose.msra.mxu0 0
        %703 = vmatprep.subr.bf16.mxu0 0
        %704 = vmatpush1.bf16.xpose.msra.mxu0 0
        %705 = vmatprep.subr.bf16.mxu0 0
        %706 = vmatpush1.bf16.xpose.msra.mxu0 0
        %707 = vmatprep.subr.bf16.mxu0 0
        %708 = vmatpush1.bf16.xpose.msra.mxu0 %v691
        %709 = vmatprep.subr.bf16.mxu0 0
        %710 = vmatpush2.bf16.xpose.msra.mxu0 0
        %711 = vmatprep.subr.bf16.mxu0 0
        %712 = vmatpush2.bf16.xpose.msra.mxu0 0
        %713 = vmatprep.subr.bf16.mxu0 0
        %714 = vmatpush2.bf16.xpose.msra.mxu0 0
        %715 = vmatprep.subr.bf16.mxu0 0
        %716 = vmatpush2.bf16.xpose.msra.mxu0 0
        %717 = vmatprep.subr.bf16.mxu0 0
        %718 = vmatpush2.bf16.xpose.msra.mxu0 0
        %719 = vmatprep.subr.bf16.mxu0 0
        %720 = vmatpush2.bf16.xpose.msra.mxu0 0
        %721 = vmatprep.subr.bf16.mxu0 0
        %722 = vmatpush2.bf16.xpose.msra.mxu0 0
        %723 = vmatprep.subr.bf16.mxu0 0
        %724 = vmatpush2.bf16.xpose.msra.mxu0 0
        %725 = vmatprep.mubr.bf16.mxu0 0
        %726 = vmatmul.mubr.bf16.gmra.mxu0 %v688
        %v727 = vpop.f32.mrf.mxu0
        %v728 = vadd.f32 0.0, %v727
        %v729 = vpop.f32.mrf.mxu0
        %v730 = vpop.f32.mrf.mxu0
        %v731 = vpop.f32.mrf.mxu0
        %732 = vdwg.mxu0
        %v733 = vmul.f32 %v728, 0.35355338
        %v734 = vsel %vm456, %v733, -inf
        %735 = vmax.xlane.f32.xlu0 %v734
        %v736 = vpop.xlane.xlu0 %735
        %v737 = vsub.f32 %v733, %v736
        %v738 = vmul.f32 %v737, 1.442695
        %v739 = vpow.pop %v738
        %v740 = vsel %vm456, %v739, 0.0
        %741 = vadd.xlane.f32.xlu0 %v740
        %v742 = vpop.xlane.xlu0 %741
        %v743 = vrcp.pop %v742
        %v744 = vmul.f32 %v739, %v743
        %v745 = vpack.c.bf16 %v744, %v744
        %746 = vrot.lane.b32.xlu0 %v452, 48
        %v747 = vpop.permute.xlu0 %746
        %v749 = vsel %vm456, %v745, 0
        %v752 = vsel %vm521, %v747, 0
        %754 = vmatprep.subr.bf16.mxu0 0
        %755 = vmatpush1.bf16.msra.mxu0 0
        %756 = vmatprep.subr.bf16.mxu0 0
        %757 = vmatpush1.bf16.msra.mxu0 0
        %758 = vmatprep.subr.bf16.mxu0 0
        %759 = vmatpush1.bf16.msra.mxu0 0
        %760 = vmatprep.subr.bf16.mxu0 0
        %761 = vmatpush1.bf16.msra.mxu0 0
        %762 = vmatprep.subr.bf16.mxu0 0
        %763 = vmatpush1.bf16.msra.mxu0 0
        %764 = vmatprep.subr.bf16.mxu0 0
        %765 = vmatpush1.bf16.msra.mxu0 0
        %766 = vmatprep.subr.bf16.mxu0 0
        %767 = vmatpush1.bf16.msra.mxu0 0
        %768 = vmatprep.subr.bf16.mxu0 0
        %769 = vmatpush1.bf16.msra.mxu0 %v752
        %770 = vmatprep.subr.bf16.mxu0 0
        %771 = vmatpush2.bf16.msra.mxu0 0
        %772 = vmatprep.subr.bf16.mxu0 0
        %773 = vmatpush2.bf16.msra.mxu0 0
        %774 = vmatprep.subr.bf16.mxu0 0
        %775 = vmatpush2.bf16.msra.mxu0 0
        %776 = vmatprep.subr.bf16.mxu0 0
        %777 = vmatpush2.bf16.msra.mxu0 0
        %778 = vmatprep.subr.bf16.mxu0 0
        %779 = vmatpush2.bf16.msra.mxu0 0
        %780 = vmatprep.subr.bf16.mxu0 0
        %781 = vmatpush2.bf16.msra.mxu0 0
        %782 = vmatprep.subr.bf16.mxu0 0
        %783 = vmatpush2.bf16.msra.mxu0 0
        %784 = vmatprep.subr.bf16.mxu0 0
        %785 = vmatpush2.bf16.msra.mxu0 0
        %786 = vmatprep.mubr.bf16.mxu0 0
        %787 = vmatmul.mubr.bf16.gmra.mxu0 %v749
        %v788 = vpop.f32.mrf.mxu0
        %v789 = vadd.f32 0.0, %v788
        %v790 = vpop.f32.mrf.mxu0
        %v791 = vpop.f32.mrf.mxu0
        %v792 = vpop.f32.mrf.mxu0
        %793 = vdwg.mxu0
        %795 = vrot.lane.b32.xlu0 %v789, 16
        %v796 = vpop.permute.xlu0 %795
        %vm798 = vcmask 195712
        %799 = vst.msk [vmem:[#allocation2] sm:$0xff] %vm798, %v796
        %800 = vrot.lane.b32.xlu0 %v452, 104
        %v801 = vpop.permute.xlu0 %800
        %802 = vrot.lane.b32.xlu0 %v452, 72
        %v803 = vpop.permute.xlu0 %802
        %v805 = vsel %vm456, %v801, 0
        %v808 = vsel %vm456, %v803, 0
        %810 = vmatprep.subr.bf16.mxu0 0
        %811 = vmatpush1.bf16.xpose.msra.mxu0 0
        %812 = vmatprep.subr.bf16.mxu0 0
        %813 = vmatpush1.bf16.xpose.msra.mxu0 0
        %814 = vmatprep.subr.bf16.mxu0 0
        %815 = vmatpush1.bf16.xpose.msra.mxu0 0
        %816 = vmatprep.subr.bf16.mxu0 0
        %817 = vmatpush1.bf16.xpose.msra.mxu0 0
        %818 = vmatprep.subr.bf16.mxu0 0
        %819 = vmatpush1.bf16.xpose.msra.mxu0 0
        %820 = vmatprep.subr.bf16.mxu0 0
        %821 = vmatpush1.bf16.xpose.msra.mxu0 0
        %822 = vmatprep.subr.bf16.mxu0 0
        %823 = vmatpush1.bf16.xpose.msra.mxu0 0
        %824 = vmatprep.subr.bf16.mxu0 0
        %825 = vmatpush1.bf16.xpose.msra.mxu0 %v808
        %826 = vmatprep.subr.bf16.mxu0 0
        %827 = vmatpush2.bf16.xpose.msra.mxu0 0
        %828 = vmatprep.subr.bf16.mxu0 0
        %829 = vmatpush2.bf16.xpose.msra.mxu0 0
        %830 = vmatprep.subr.bf16.mxu0 0
        %831 = vmatpush2.bf16.xpose.msra.mxu0 0
        %832 = vmatprep.subr.bf16.mxu0 0
        %833 = vmatpush2.bf16.xpose.msra.mxu0 0
        %834 = vmatprep.subr.bf16.mxu0 0
        %835 = vmatpush2.bf16.xpose.msra.mxu0 0
        %836 = vmatprep.subr.bf16.mxu0 0
        %837 = vmatpush2.bf16.xpose.msra.mxu0 0
        %838 = vmatprep.subr.bf16.mxu0 0
        %839 = vmatpush2.bf16.xpose.msra.mxu0 0
        %840 = vmatprep.subr.bf16.mxu0 0
        %841 = vmatpush2.bf16.xpose.msra.mxu0 0
        %842 = vmatprep.mubr.bf16.mxu0 0
        %843 = vmatmul.mubr.bf16.gmra.mxu0 %v805
        %v844 = vpop.f32.mrf.mxu0
        %v845 = vadd.f32 0.0, %v844
        %v846 = vpop.f32.mrf.mxu0
        %v847 = vpop.f32.mrf.mxu0
        %v848 = vpop.f32.mrf.mxu0
        %849 = vdwg.mxu0
        %v850 = vmul.f32 %v845, 0.35355338
        %v851 = vsel %vm456, %v850, -inf
        %852 = vmax.xlane.f32.xlu0 %v851
        %v853 = vpop.xlane.xlu0 %852
        %v854 = vsub.f32 %v850, %v853
        %v855 = vmul.f32 %v854, 1.442695
        %v856 = vpow.pop %v855
        %v857 = vsel %vm456, %v856, 0.0
        %858 = vadd.xlane.f32.xlu0 %v857
        %v859 = vpop.xlane.xlu0 %858
        %v860 = vrcp.pop %v859
        %v861 = vmul.f32 %v856, %v860
        %v862 = vpack.c.bf16 %v861, %v861
        %863 = vrot.lane.b32.xlu0 %v452, 40
        %v864 = vpop.permute.xlu0 %863
        %v866 = vsel %vm456, %v862, 0
        %v869 = vsel %vm521, %v864, 0
        %871 = vmatprep.subr.bf16.mxu0 0
        %872 = vmatpush1.bf16.msra.mxu0 0
        %873 = vmatprep.subr.bf16.mxu0 0
        %874 = vmatpush1.bf16.msra.mxu0 0
        %875 = vmatprep.subr.bf16.mxu0 0
        %876 = vmatpush1.bf16.msra.mxu0 0
        %877 = vmatprep.subr.bf16.mxu0 0
        %878 = vmatpush1.bf16.msra.mxu0 0
        %879 = vmatprep.subr.bf16.mxu0 0
        %880 = vmatpush1.bf16.msra.mxu0 0
        %881 = vmatprep.subr.bf16.mxu0 0
        %882 = vmatpush1.bf16.msra.mxu0 0
        %883 = vmatprep.subr.bf16.mxu0 0
        %884 = vmatpush1.bf16.msra.mxu0 0
        %885 = vmatprep.subr.bf16.mxu0 0
        %886 = vmatpush1.bf16.msra.mxu0 %v869
        %887 = vmatprep.subr.bf16.mxu0 0
        %888 = vmatpush2.bf16.msra.mxu0 0
        %889 = vmatprep.subr.bf16.mxu0 0
        %890 = vmatpush2.bf16.msra.mxu0 0
        %891 = vmatprep.subr.bf16.mxu0 0
        %892 = vmatpush2.bf16.msra.mxu0 0
        %893 = vmatprep.subr.bf16.mxu0 0
        %894 = vmatpush2.bf16.msra.mxu0 0
        %895 = vmatprep.subr.bf16.mxu0 0
        %896 = vmatpush2.bf16.msra.mxu0 0
        %897 = vmatprep.subr.bf16.mxu0 0
        %898 = vmatpush2.bf16.msra.mxu0 0
        %899 = vmatprep.subr.bf16.mxu0 0
        %900 = vmatpush2.bf16.msra.mxu0 0
        %901 = vmatprep.subr.bf16.mxu0 0
        %902 = vmatpush2.bf16.msra.mxu0 0
        %903 = vmatprep.mubr.bf16.mxu0 0
        %904 = vmatmul.mubr.bf16.gmra.mxu0 %v866
        %v905 = vpop.f32.mrf.mxu0
        %v906 = vadd.f32 0.0, %v905
        %v907 = vpop.f32.mrf.mxu0
        %v908 = vpop.f32.mrf.mxu0
        %v909 = vpop.f32.mrf.mxu0
        %910 = vdwg.mxu0
        %912 = vrot.lane.b32.xlu0 %v906, 24
        %v913 = vpop.permute.xlu0 %912
        %vm915 = vcmask 261312
        %916 = vst.msk [vmem:[#allocation2] sm:$0xff] %vm915, %v913
        %v917 = vld [vmem:[#allocation2] sm:$0xff]
        %v918 = vpack.c.bf16 %v917, %v917
        %v919 = vld [vmem:[%s3] sm:$0xf]
        %v920 = vld [vmem:[%s3 + $0x4] sm:$0xf]
        %v921 = vld [vmem:[%s3 + $0x8] sm:$0xf]
        %v922 = vld [vmem:[%s3 + $0xc] sm:$0xf]
        %v923 = vld [vmem:[%s4] sm:$0x1]
        %v925 = vlaneseq
        %v926 = vshrl.u32 %v925, 7
        %v927 = vsub.s32 0, %v926
        %v928 = vrot.slane %v923, %v927
        %v934 = vunpack.c.l.b16 %v919
        %v935 = vunpack.c.l.b16 %v920
        %v936 = vunpack.c.l.b16 %v921
        %v937 = vunpack.c.l.b16 %v922
        %v938 = vpack.c.b16 %v935, %v934
        %v939 = vpack.c.b16 %v937, %v936
        %v943 = vsel %vm408, %v918, 0
        %945 = vmatprep.subr.bf16.mxu0 0
        %946 = vmatpush1.bf16.msra.mxu0 0
        %947 = vmatprep.subr.bf16.mxu0 0
        %948 = vmatpush1.bf16.msra.mxu0 0
        %949 = vmatprep.subr.bf16.mxu0 0
        %950 = vmatpush1.bf16.msra.mxu0 0
        %951 = vmatprep.subr.bf16.mxu0 0
        %952 = vmatpush1.bf16.msra.mxu0 0
        %953 = vmatprep.subr.bf16.mxu0 0
        %954 = vmatpush1.bf16.msra.mxu0 0
        %955 = vmatprep.subr.bf16.mxu0 0
        %956 = vmatpush1.bf16.msra.mxu0 0
        %957 = vmatprep.subr.bf16.mxu0 0
        %958 = vmatpush1.bf16.msra.mxu0 %v939
        %959 = vmatprep.subr.bf16.mxu0 0
        %960 = vmatpush1.bf16.msra.mxu0 %v938
        %961 = vmatprep.subr.bf16.mxu0 0
        %962 = vmatpush2.bf16.msra.mxu0 0
        %963 = vmatprep.subr.bf16.mxu0 0
        %964 = vmatpush2.bf16.msra.mxu0 0
        %965 = vmatprep.subr.bf16.mxu0 0
        %966 = vmatpush2.bf16.msra.mxu0 0
        %967 = vmatprep.subr.bf16.mxu0 0
        %968 = vmatpush2.bf16.msra.mxu0 0
        %969 = vmatprep.subr.bf16.mxu0 0
        %970 = vmatpush2.bf16.msra.mxu0 0
        %971 = vmatprep.subr.bf16.mxu0 0
        %972 = vmatpush2.bf16.msra.mxu0 0
        %973 = vmatprep.subr.bf16.mxu0 0
        %974 = vmatpush2.bf16.msra.mxu0 0
        %975 = vmatprep.subr.bf16.mxu0 0
        %976 = vmatpush2.bf16.msra.mxu0 0
        %977 = vmatprep.mubr.bf16.mxu0 0
        %978 = vmatmul.mubr.bf16.gmra.mxu0 %v943
        %v979 = vpop.f32.mrf.mxu0
        %v980 = vadd.f32 %v928, %v979
        %v981 = vpop.f32.mrf.mxu0
        %v982 = vpop.f32.mrf.mxu0
        %v983 = vpop.f32.mrf.mxu0
        %984 = vdwg.mxu0
        %v985 = vld [vmem:[%s5] sm:$0x1]
        %v986 = vld [vmem:[%s6] sm:$0x1]
        %v987 = vadd.f32 %v383, %v980
        %v988 = vsel %vm408, %v987, 0.0
        %989 = vadd.xlane.f32.xlu0 %v988
        %v990 = vpop.xlane.xlu0 %989
        %v991 = vrcp.pop 32.0
        %v992 = vmul.f32 %v990, %v991
        %v993 = vsub.f32 %v987, %v992
        %v994 = vmul.f32 %v993, %v993
        %v995 = vsel %vm408, %v994, 0.0
        %996 = vadd.xlane.f32.xlu0 %v995
        %v997 = vpop.xlane.xlu0 %996
        %v998 = vmul.f32 %v997, 0.032258064
        %v999 = vrsqrt.pop %v998
        %v1000 = vmul.f32 %v998, %v999
        %vm1001 = vcmp.eq.f32.partialorder %v998, inf
        %v1002 = vsel %vm1001, %v998, %v1000
        %vm1003 = vcmp.eq.f32.partialorder %v998, 0.0
        %v1004 = vand.u32 %v998, 2147483648
        %v1005 = vsel %vm1003, %v1004, %v1002
        %v1006 = vadd.f32 %v1005, 1e-06
        %v1007 = vrcp.pop %v1006
        %v1008 = vmul.f32 1.0, %v1007
        %v1010 = vlaneseq
        %v1011 = vshrl.u32 %v1010, 7
        %v1012 = vsub.s32 0, %v1011
        %v1013 = vrot.slane %v985, %v1012
        %v1015 = vmul.f32 %v1013, %v993
        %v1016 = vmul.f32 %v1015, %v1008
        %v1018 = vlaneseq
        %v1019 = vshrl.u32 %v1018, 7
        %v1020 = vsub.s32 0, %v1019
        %v1021 = vrot.slane %v986, %v1020
        %v1023 = vadd.f32 %v1016, %v1021
        %v1024 = vpack.c.bf16 %v1023, %v1023
        %v1025 = vld [vmem:[%s7] sm:$0xf]
        %v1026 = vld [vmem:[%s7 + $0x4] sm:$0xf]
        %v1027 = vld [vmem:[%s7 + $0x8] sm:$0xf]
        %v1028 = vld [vmem:[%s7 + $0xc] sm:$0xf]
        %v1029 = vld [vmem:[%s8] sm:$0x1]
        %v1031 = vlaneseq
        %v1032 = vshrl.u32 %v1031, 7
        %v1033 = vsub.s32 0, %v1032
        %v1034 = vrot.slane %v1029, %v1033
        %v1040 = vunpack.c.l.b16 %v1025
        %v1041 = vunpack.c.l.b16 %v1026
        %v1042 = vunpack.c.l.b16 %v1027
        %v1043 = vunpack.c.l.b16 %v1028
        %v1044 = vpack.c.b16 %v1041, %v1040
        %v1045 = vpack.c.b16 %v1043, %v1042
        %v1049 = vsel %vm408, %v1024, 0
        %1051 = vmatprep.subr.bf16.mxu0 0
        %1052 = vmatpush1.bf16.msra.mxu0 0
        %1053 = vmatprep.subr.bf16.mxu0 0
        %1054 = vmatpush1.bf16.msra.mxu0 0
        %1055 = vmatprep.subr.bf16.mxu0 0
        %1056 = vmatpush1.bf16.msra.mxu0 0
        %1057 = vmatprep.subr.bf16.mxu0 0
        %1058 = vmatpush1.bf16.msra.mxu0 0
        %1059 = vmatprep.subr.bf16.mxu0 0
        %1060 = vmatpush1.bf16.msra.mxu0 0
        %1061 = vmatprep.subr.bf16.mxu0 0
        %1062 = vmatpush1.bf16.msra.mxu0 0
        %1063 = vmatprep.subr.bf16.mxu0 0
        %1064 = vmatpush1.bf16.msra.mxu0 %v1045
        %1065 = vmatprep.subr.bf16.mxu0 0
        %1066 = vmatpush1.bf16.msra.mxu0 %v1044
        %1067 = vmatprep.subr.bf16.mxu0 0
        %1068 = vmatpush2.bf16.msra.mxu0 0
        %1069 = vmatprep.subr.bf16.mxu0 0
        %1070 = vmatpush2.bf16.msra.mxu0 0
        %1071 = vmatprep.subr.bf16.mxu0 0
        %1072 = vmatpush2.bf16.msra.mxu0 0
        %1073 = vmatprep.subr.bf16.mxu0 0
        %1074 = vmatpush2.bf16.msra.mxu0 0
        %1075 = vmatprep.subr.bf16.mxu0 0
        %1076 = vmatpush2.bf16.msra.mxu0 0
        %1077 = vmatprep.subr.bf16.mxu0 0
        %1078 = vmatpush2.bf16.msra.mxu0 0
        %1079 = vmatprep.subr.bf16.mxu0 0
        %1080 = vmatpush2.bf16.msra.mxu0 0
        %1081 = vmatprep.subr.bf16.mxu0 0
        %1082 = vmatpush2.bf16.msra.mxu0 0
        %1083 = vmatprep.mubr.bf16.mxu0 0
        %1084 = vmatmul.mubr.bf16.gmra.mxu0 %v1049
        %v1085 = vpop.f32.mrf.mxu0
        %v1086 = vadd.f32 %v1034, %v1085
        %v1087 = vpop.f32.mrf.mxu0
        %v1088 = vpop.f32.mrf.mxu0
        %v1089 = vpop.f32.mrf.mxu0
        %1090 = vdwg.mxu0
        %v1091 = vmax.f32 %v1086, 0.0
        %v1092 = vpack.c.bf16 %v1091, %v1091
        %v1093 = vld [vmem:[%s9] sm:$0xf]
        %v1094 = vld [vmem:[%s9 + $0x4] sm:$0xf]
        %v1095 = vld [vmem:[%s9 + $0x8] sm:$0xf]
        %v1096 = vld [vmem:[%s9 + $0xc] sm:$0xf]
        %v1097 = vld [vmem:[%s9 + $0x10] sm:$0xf]
        %v1098 = vld [vmem:[%s9 + $0x14] sm:$0xf]
        %v1099 = vld [vmem:[%s9 + $0x18] sm:$0xf]
        %v1100 = vld [vmem:[%s9 + $0x1c] sm:$0xf]
        %v1101 = vld [vmem:[%s9 + $0x20] sm:$0xf]
        %v1102 = vld [vmem:[%s9 + $0x24] sm:$0xf]
        %v1103 = vld [vmem:[%s9 + $0x28] sm:$0xf]
        %v1104 = vld [vmem:[%s9 + $0x2c] sm:$0xf]
        %v1105 = vld [vmem:[%s9 + $0x30] sm:$0xf]
        %v1106 = vld [vmem:[%s9 + $0x34] sm:$0xf]
        %v1107 = vld [vmem:[%s9 + $0x38] sm:$0xf]
        %v1108 = vld [vmem:[%s9 + $0x3c] sm:$0xf]
        %v1109 = vld [vmem:[%s10] sm:$0x1]
        %v1111 = vlaneseq
        %v1112 = vshrl.u32 %v1111, 7
        %v1113 = vsub.s32 0, %v1112
        %v1114 = vrot.slane %v1109, %v1113
        %v1132 = vunpack.c.l.b16 %v1093
        %v1133 = vunpack.c.l.b16 %v1094
        %v1134 = vunpack.c.l.b16 %v1095
        %v1135 = vunpack.c.l.b16 %v1096
        %v1136 = vunpack.c.l.b16 %v1097
        %v1137 = vunpack.c.l.b16 %v1098
        %v1138 = vunpack.c.l.b16 %v1099
        %v1139 = vunpack.c.l.b16 %v1100
        %v1140 = vunpack.c.l.b16 %v1101
        %v1141 = vunpack.c.l.b16 %v1102
        %v1142 = vunpack.c.l.b16 %v1103
        %v1143 = vunpack.c.l.b16 %v1104
        %v1144 = vunpack.c.l.b16 %v1105
        %v1145 = vunpack.c.l.b16 %v1106
        %v1146 = vunpack.c.l.b16 %v1107
        %v1147 = vunpack.c.l.b16 %v1108
        %v1148 = vpack.c.b16 %v1133, %v1132
        %v1149 = vpack.c.b16 %v1135, %v1134
        %v1150 = vpack.c.b16 %v1137, %v1136
        %v1151 = vpack.c.b16 %v1139, %v1138
        %v1152 = vpack.c.b16 %v1141, %v1140
        %v1153 = vpack.c.b16 %v1143, %v1142
        %v1154 = vpack.c.b16 %v1145, %v1144
        %v1155 = vpack.c.b16 %v1147, %v1146
        %1164 = vmatprep.subr.bf16.mxu0 0
        %1165 = vmatpush1.bf16.msra.mxu0 %v1155
        %1166 = vmatprep.subr.bf16.mxu0 0
        %1167 = vmatpush1.bf16.msra.mxu0 %v1154
        %1168 = vmatprep.subr.bf16.mxu0 0
        %1169 = vmatpush1.bf16.msra.mxu0 %v1153
        %1170 = vmatprep.subr.bf16.mxu0 0
        %1171 = vmatpush1.bf16.msra.mxu0 %v1152
        %1172 = vmatprep.subr.bf16.mxu0 0
        %1173 = vmatpush1.bf16.msra.mxu0 %v1151
        %1174 = vmatprep.subr.bf16.mxu0 0
        %1175 = vmatpush1.bf16.msra.mxu0 %v1150
        %1176 = vmatprep.subr.bf16.mxu0 0
        %1177 = vmatpush1.bf16.msra.mxu0 %v1149
        %1178 = vmatprep.subr.bf16.mxu0 0
        %1179 = vmatpush1.bf16.msra.mxu0 %v1148
        %1180 = vmatprep.subr.bf16.mxu0 0
        %1181 = vmatpush2.bf16.msra.mxu0 0
        %1182 = vmatprep.subr.bf16.mxu0 0
        %1183 = vmatpush2.bf16.msra.mxu0 0
        %1184 = vmatprep.subr.bf16.mxu0 0
        %1185 = vmatpush2.bf16.msra.mxu0 0
        %1186 = vmatprep.subr.bf16.mxu0 0
        %1187 = vmatpush2.bf16.msra.mxu0 0
        %1188 = vmatprep.subr.bf16.mxu0 0
        %1189 = vmatpush2.bf16.msra.mxu0 0
        %1190 = vmatprep.subr.bf16.mxu0 0
        %1191 = vmatpush2.bf16.msra.mxu0 0
        %1192 = vmatprep.subr.bf16.mxu0 0
        %1193 = vmatpush2.bf16.msra.mxu0 0
        %1194 = vmatprep.subr.bf16.mxu0 0
        %1195 = vmatpush2.bf16.msra.mxu0 0
        %1196 = vmatprep.mubr.bf16.mxu0 0
        %1197 = vmatmul.mubr.bf16.gmra.mxu0 %v1092
        %v1198 = vpop.f32.mrf.mxu0
        %v1199 = vadd.f32 %v1114, %v1198
        %v1200 = vpop.f32.mrf.mxu0
        %v1201 = vpop.f32.mrf.mxu0
        %v1202 = vpop.f32.mrf.mxu0
        %1203 = vdwg.mxu0
        %v1204 = vadd.f32 %v1023, %v1199
        %v1205 = vsel %vm408, %v1204, 0.0
        %1206 = vadd.xlane.f32.xlu0 %v1205
        %v1207 = vpop.xlane.xlu0 %1206
        %v1208 = vmul.f32 %v1207, %v991
        %v1209 = vsub.f32 %v1204, %v1208
        %v1210 = vmul.f32 %v1209, %v1209
        %v1211 = vsel %vm408, %v1210, 0.0
        %1212 = vadd.xlane.f32.xlu0 %v1211
        %v1213 = vpop.xlane.xlu0 %1212
        %v1214 = vmul.f32 %v1213, 0.032258064
        %v1215 = vrsqrt.pop %v1214
        %v1216 = vmul.f32 %v1214, %v1215
        %vm1217 = vcmp.eq.f32.partialorder %v1214, inf
        %v1218 = vsel %vm1217, %v1214, %v1216
        %vm1219 = vcmp.eq.f32.partialorder %v1214, 0.0
        %v1220 = vand.u32 %v1214, 2147483648
        %v1221 = vsel %vm1219, %v1220, %v1218
        %v1222 = vadd.f32 %v1221, 1e-06
        %v1223 = vrcp.pop %v1222
        %v1224 = vmul.f32 1.0, %v1223
        %v1225 = vmul.f32 %v1013, %v1209
        %v1226 = vmul.f32 %v1225, %v1224
        %v1227 = vadd.f32 %v1226, %v1021
        %1228 = vst.msk [vmem:[%s377] sm:$0xff] %vm408, %v1227
        %s1229 = sand.u32 %s269, 1
        %s1230 = scalar_lea.sflag [#allocation4], %s1229
        %s1231 = sand.u32 %s269, 1
        %s1232 = smul.addr %s1231, 8
        %s1233 = scalar_lea.vmem [#allocation3], %s1232
        // Predicated region
        $region65: #{tpu_custom_call.1} parent=63 // pred_check
          %p1234 = pneg %p279
        $region66: #{tpu_custom_call.1} parent=63 // pred_check_branch
          %1236 = sbr.rel (%p1234) target = $region68
        $region67: #{tpu_custom_call.1} parent=63 // pred_region
          %s1238 = ssub.s32 128, 128
          %1239 = vsyncadd %s1230, %s1238
          %s1240 = smul.addr %s25, 128
          %s1241 = scalar_lea.hbm %s11, %s1240
          %s1243 = sshll.u32 %s1233, 4
          %s1244 = int_to_ptr.vmem [resolvable:$true] %s1243
          %1246 = dma.vmem_to_hbm [thread:$0]  %s1244, 128, %s1241, %s1230
        $region68: #{tpu_custom_call.1} parent=63 // pred_fallthru
          _
      $region64: #{tpu_custom_call.1} parent=5 // pred_fallthru
        _
      %p1247 = scmp.le.s32.totalorder 2, %s20
      // Predicated region
      $region69: #{tpu_custom_call.1} parent=5 // pred_check
        %p1248 = pneg %p1247
      $region70: #{tpu_custom_call.1} parent=5 // pred_check_branch
        %1250 = sbr.rel (%p1248) target = $region72
      $region71: #{tpu_custom_call.1} parent=5 // pred_region
        %s1251 = ssub.s32 %s20, 2
        // Predicated region
        $region73: #{tpu_custom_call.1} parent=71 // pred_check
          %p1252 = pneg %p285
        $region74: #{tpu_custom_call.1} parent=71 // pred_check_branch
          %1254 = sbr.rel (%p1252) target = $region76
        $region75: #{tpu_custom_call.1} parent=71 // pred_region
          %s1255 = sand.u32 %s270, 1
          %s1256 = scalar_lea.sflag [#allocation4], %s1255
          %s1257 = sand.u32 %s270, 1
          %s1258 = smul.addr %s1257, 8
          %s1259 = scalar_lea.vmem [#allocation3], %s1258
          %1260 = dma.done %s1256, 128
        $region76: #{tpu_custom_call.1} parent=71 // pred_fallthru
          _
      $region72: #{tpu_custom_call.1} parent=5 // pred_fallthru
        _
    $region6: #{tpu_custom_call.1} parent=1 // loop_footer
      %s24 = sadd.s32 1, %s20
    $region7: #{tpu_custom_call.1} parent=1 // loop_footer_branch
      %19 = sbr.rel target = $region3
    $region8: #{tpu_custom_call.1} parent=1 // loop_exit
      _
    %1261 = vsyncpa [#allocation4], 1
    %s1262 = scalar_lea.sflag [#allocation4], 1
    %1263 = vsyncpa %s1262, 1

</llo_original>
